<compile_context>
chip_gen: v6e
topology: v6e:2x2x1
jax: 0.10.0
libtpu: 0.0.40
codegen_flags: <defaults>
</compile_context>

<pallas_src>
import functools
import math

import jax
import jax.numpy as jnp
from jax import lax
from jax.experimental import pallas as pl
from jax.experimental.pallas import tpu as pltpu

_MIB = 1024 * 1024
_BF16 = jnp.bfloat16


# ----------------------------- shared math ---------------------------------

def _layernorm(x, scale, shift, eps=1e-5):
    # f32 math throughout (matches torch LayerNorm with unbiased=False).
    mean = jnp.mean(x, axis=-1, keepdims=True)
    var = jnp.mean((x - mean) ** 2, axis=-1, keepdims=True)
    return scale * (x - mean) * lax.rsqrt(var + eps) + shift


def _gelu(x):
    c = jnp.float32(math.sqrt(2.0 / math.pi))
    return 0.5 * x * (1.0 + jnp.tanh(c * (x + 0.044715 * x * x * x)))


# ----------------------------- VMEM budgeting -------------------------------

def _physical_vmem_bytes():
    # Trace-time hardware probe.  Conservative 64 MiB fallback (v7x size) if the
    # query is unavailable, so we never over-request physical VMEM.
    try:
        return int(pltpu.get_tpu_info().vmem_capacity_bytes)
    except Exception:
        return 64 * _MIB


def _vmem_budget(need_bytes):
    # Leave ~22% headroom for Mosaic internal scratch: <= ~50 MiB on v7x,
    # up to ~100 MiB on v5e/v6e.  Never request 100% of physical VMEM.
    cap = int(_physical_vmem_bytes() * 0.78)
    return int(max(32 * _MIB, min(cap, int(need_bytes))))


def _ffn_chunk(hidden):
    """Largest multiple-of-128 chunk <= 512 that divides the FFN hidden dim."""
    if hidden <= 512:
        return hidden
    for c in (512, 384, 256, 128):
        if hidden % c == 0:
            return c
    return hidden


# ----------------------------- Pallas kernels -------------------------------

def gpt_blocks_kernel(num_heads, ffn_chunk,
                      x_ref, ln1_s, ln1_b, wqkv, wo, bo,
                      ln2_s, ln2_b, w1, b1, w2, b2,
                      lnf_s, lnf_b, o_ref):
    """All transformer blocks (+ final LayerNorm) for one batch element.

    grid = (B, L).  The residual stream lives in o_ref (output block index is
    constant across the layer axis -> VMEM resident); layer-l weights are
    streamed by BlockSpec double-buffering so layer l+1's DMA hides under
    layer l's compute.
    """
    layer = pl.program_id(1)
    n_layers = pl.num_programs(1)

    @pl.when(layer == 0)
    def _():
        o_ref[0] = x_ref[0]                    # load residual stream once per b

    x = o_ref[0]                               # (T, D) f32
    T, D = x.shape
    H = num_heads
    hd = D // H

    # ---------------- multi-head causal self-attention ----------------
    h = _layernorm(x, ln1_s[0], ln1_b[0]).astype(_BF16)
    # fused Q|K|V matmul; 1/sqrt(D) is pre-folded into the Q columns of wqkv
    qkv = jnp.dot(h, wqkv[0], preferred_element_type=jnp.float32)     # (T, 3D)
    q = qkv[:, :D].astype(_BF16).reshape(T, H, hd)
    k = qkv[:, D:2 * D].astype(_BF16).reshape(T, H, hd)
    v = qkv[:, 2 * D:].astype(_BF16).reshape(T, H, hd)

    # batched-over-heads QK^T: single dot_general, no per-head loop / concat
    s = jnp.einsum('qhd,khd->hqk', q, k,
                   preferred_element_type=jnp.float32)                # (H, T, T)
    row = lax.broadcasted_iota(jnp.int32, (1, T, T), 1)
    col = lax.broadcasted_iota(jnp.int32, (1, T, T), 2)
    s = jnp.where(col > row, -jnp.inf, s)                             # causal
    m = jnp.max(s, axis=-1, keepdims=True)
    e = jnp.exp(s - m)                                                # f32 EUP
    p = (e * pl.reciprocal(jnp.sum(e, axis=-1, keepdims=True),
                           approx=True)).astype(_BF16)
    # TODO(synk): Q-row-tiled online-softmax (flash) with causal tile skipping
    #             for long contexts; bounds the (H,T,T) buffer to (H,tq,tk).
    ctx = jnp.einsum('hqk,khd->qhd', p, v,
                     preferred_element_type=jnp.float32).reshape(T, D)
    attn = jnp.dot(ctx.astype(_BF16), wo[0],
                   preferred_element_type=jnp.float32) + bo[0]
    x = x + attn                               # residual (dropout == identity)

    # ---------------- feed-forward (hidden dim tiled) ------------------
    h2 = _layernorm(x, ln2_s[0], ln2_b[0]).astype(_BF16)
    hidden = w1.shape[-1]
    n_chunks = hidden // ffn_chunk
    if n_chunks <= 1:
        ff = _gelu(jnp.dot(h2, w1[0], preferred_element_type=jnp.float32)
                   + b1[0])
        ff = jnp.dot(ff.astype(_BF16), w2[0],
                     preferred_element_type=jnp.float32)
    else:
        def ff_body(c, acc):
            start = pl.multiple_of(c * ffn_chunk, ffn_chunk)
            hc = jnp.dot(h2, w1[0, :, pl.ds(start, ffn_chunk)],
                         preferred_element_type=jnp.float32)
            hc = _gelu(hc + b1[0, :, pl.ds(start, ffn_chunk)]).astype(_BF16)
            return acc + jnp.dot(hc, w2[0, pl.ds(start, ffn_chunk), :],
                                 preferred_element_type=jnp.float32)
        ff = lax.fori_loop(0, n_chunks, ff_body,
                           jnp.zeros((T, D), jnp.float32), unroll=True)
    x = x + ff + b2[0]

    @pl.when(layer < n_layers - 1)
    def _():
        o_ref[0] = x

    @pl.when(layer == n_layers - 1)
    def _():
        # Fuse the final LayerNorm into the last layer's epilogue so the
        # lm-head kernel never recomputes it per vocab tile.
        o_ref[0] = _layernorm(x, lnf_s[...], lnf_b[...])


def lm_head_kernel(xf_ref, wout_ref, o_ref):
    """lm-head projection for one (batch, T-tile, vocab-tile)."""
    o_ref[0] = jnp.dot(xf_ref[0].astype(_BF16), wout_ref[...],
                       preferred_element_type=jnp.float32)


# ----------------------------- wrappers -------------------------------------

def run_gpt_blocks(x, params, num_heads):
    B, T, D = x.shape
    L = params['wqkv'].shape[0]
    hidden = params['w1'].shape[-1]
    ffn_chunk = _ffn_chunk(hidden)

    wnames = ['ln1_s', 'ln1_b', 'wqkv', 'wo', 'bo',
              'ln2_s', 'ln2_b', 'w1', 'b1', 'w2', 'b2']
    weights = [params[n] for n in wnames]

    def layer_spec(p):
        return pl.BlockSpec((1,) + p.shape[1:], lambda b, l: (l, 0, 0))

    in_specs = [pl.BlockSpec((1, T, D), lambda b, l: (b, 0, 0))]        # x
    in_specs += [layer_spec(p) for p in weights]                        # per-layer
    in_specs += [pl.BlockSpec(params['lnf_s'].shape, lambda b, l: (0, 0)),
                 pl.BlockSpec(params['lnf_b'].shape, lambda b, l: (0, 0))]

    # VMEM need: double-buffered layer weights + resident residual + temporaries.
    layer_w_bytes = sum((int(p.size) // L) * p.dtype.itemsize for p in weights)
    act = T * D * 4
    need = (2 * layer_w_bytes                       # layer l / l+1 weights
            + 4 * act                               # x in + resident out blocks
            + 3 * T * D * (4 + 2)                   # qkv f32 + bf16 views
            + 2 * num_heads * T * T * 4             # scores + exp
            + 3 * act                               # ctx / attn / ffn acc
            + 2 * T * ffn_chunk * 4)                # ffn hidden chunk
    need = int(need * 1.5)                          # margin for Mosaic temps

    cost = pl.CostEstimate(
        flops=int(B * L * (24 * T * D * D + 4 * T * T * D)),
        transcendentals=int(B * L * (num_heads * T * T + 4 * T * D + 4 * T)),
        bytes_accessed=int(2 * B * T * D * 4 + B * L * layer_w_bytes))

    return pl.pallas_call(
        functools.partial(gpt_blocks_kernel, num_heads, ffn_chunk),
        out_shape=jax.ShapeDtypeStruct((B, T, D), jnp.float32),
        grid=(B, L),
        in_specs=in_specs,
        out_specs=pl.BlockSpec((1, T, D), lambda b, l: (b, 0, 0)),
        input_output_aliases={0: 0},                # reuse x's HBM buffer
        compiler_params=pltpu.CompilerParams(
            dimension_semantics=("parallel", "arbitrary"),
            vmem_limit_bytes=_vmem_budget(need)),
        cost_estimate=cost,
    )(x, *weights, params['lnf_s'], params['lnf_b'])


def run_lm_head(xf, params):
    B, T, D = xf.shape
    V = params['wout'].shape[1]
    TT = T if T <= 512 else 256                     # T tile (mult of 8)
    TV = V if V <= 2048 else 2048                   # lane-dense vocab tile
    nt, nv = pl.cdiv(T, TT), pl.cdiv(V, TV)

    need = int((2 * TT * D * 4 + 2 * D * TV * 2 + 2 * TT * TV * 4) * 1.5)
    cost = pl.CostEstimate(
        flops=int(2 * B * T * D * V), transcendentals=0,
        bytes_accessed=int(B * T * D * 4 + B * D * V * 2 + B * T * V * 4))

    return pl.pallas_call(
        lm_head_kernel,
        out_shape=jax.ShapeDtypeStruct((B, T, V), jnp.float32),
        grid=(B, nt, nv),
        in_specs=[pl.BlockSpec((1, TT, D), lambda b, t, v: (b, t, 0)),
                  pl.BlockSpec((D, TV), lambda b, t, v: (0, v))],
        out_specs=pl.BlockSpec((1, TT, TV), lambda b, t, v: (b, t, v)),
        compiler_params=pltpu.CompilerParams(
            dimension_semantics=("parallel", "parallel", "parallel"),
            vmem_limit_bytes=_vmem_budget(need)),
        cost_estimate=cost,
    )(xf, params['wout'])


@functools.partial(jax.jit, static_argnames=("num_heads",))
def gpt_forward(in_idx, params, num_heads):
    T = in_idx.shape[1]
    # token + position embedding lookup (gather glue in plain JAX); dropout = id
    x = params['tok_emb'][in_idx] + params['pos_emb'][:T]
    xf = run_gpt_blocks(x, params, num_heads)       # all blocks + final LN
    return run_lm_head(xf, params)                  # logits


# ----------------------------- parameter init -------------------------------

def init_params(key, cfg):
    D, V = cfg['emb_dim'], cfg['vocab_size']
    C, L = cfg['context_length'], cfg['n_layers']
    keys = iter(jax.random.split(key, 8 * L + 8))

    def nrm(shape, dtype=jnp.float32):
        return (0.02 * jax.random.normal(next(keys), shape, jnp.float32)).astype(dtype)

    # torch spec: softmax(scores / d_out**0.5) with d_out == emb_dim, so fold
    # 1/sqrt(emb_dim) into the Q columns of the fused QKV weight at init time.
    inv_scale = 1.0 / math.sqrt(D)

    wqkv, wo, w1, w2 = [], [], [], []
    for _ in range(L):
        wq = nrm((D, D)) * inv_scale
        wk = nrm((D, D))
        wv = nrm((D, D))
        wqkv.append(jnp.concatenate([wq, wk, wv], axis=1).astype(_BF16))
        wo.append(nrm((D, D), _BF16))
        w1.append(nrm((D, 4 * D), _BF16))
        w2.append(nrm((4 * D, D), _BF16))

    return {
        'tok_emb': nrm((V, D)),
        'pos_emb': nrm((C, D)),
        # per-layer weights stacked along a leading L axis (streamed per layer)
        'ln1_s': jnp.ones((L, 1, D), jnp.float32),
        'ln1_b': jnp.zeros((L, 1, D), jnp.float32),
        'wqkv': jnp.stack(wqkv),                 # (L, D, 3D) bf16
        'wo': jnp.stack(wo),                     # (L, D, D)  bf16
        'bo': jnp.zeros((L, 1, D), jnp.float32),
        'ln2_s': jnp.ones((L, 1, D), jnp.float32),
        'ln2_b': jnp.zeros((L, 1, D), jnp.float32),
        'w1': jnp.stack(w1),                     # (L, D, 4D) bf16
        'b1': jnp.zeros((L, 1, 4 * D), jnp.float32),
        'w2': jnp.stack(w2),                     # (L, 4D, D) bf16
        'b2': jnp.zeros((L, 1, D), jnp.float32),
        'lnf_s': jnp.ones((1, D), jnp.float32),
        'lnf_b': jnp.zeros((1, D), jnp.float32),
        'wout': nrm((D, V), _BF16),
    }


# ----------------------------- reference (same mixed precision) -------------

def ref_forward(in_idx, params, num_heads):
    """Plain-JAX forward mirroring the kernel's bf16-operand / f32-accum scheme."""
    H = num_heads
    T = in_idx.shape[1]
    x = params['tok_emb'][in_idx] + params['pos_emb'][:T]
    B, _, D = x.shape
    hd = D // H
    L = params['wqkv'].shape[0]
    mask = jnp.triu(jnp.ones((T, T), bool), 1)

    def mm(a, b):
        return jnp.dot(a.astype(_BF16), b.astype(_BF16),
                       preferred_element_type=jnp.float32)

    for li in range(L):
        h = _layernorm(x, params['ln1_s'][li], params['ln1_b'][li])
        qkv = mm(h, params['wqkv'][li])                                 # (B,T,3D)
        q = qkv[..., :D].astype(_BF16).reshape(B, T, H, hd).transpose(0, 2, 1, 3)
        k = qkv[..., D:2 * D].astype(_BF16).reshape(B, T, H, hd).transpose(0, 2, 1, 3)
        v = qkv[..., 2 * D:].astype(_BF16).reshape(B, T, H, hd).transpose(0, 2, 1, 3)
        s = jnp.einsum('bhqe,bhke->bhqk', q, k,
                       preferred_element_type=jnp.float32)
        s = jnp.where(mask, -jnp.inf, s)
        p = jax.nn.softmax(s, axis=-1).astype(_BF16)
        ctx = jnp.einsum('bhqk,bhke->bhqe', p, v,
                         preferred_element_type=jnp.float32)
        ctx = ctx.transpose(0, 2, 1, 3).reshape(B, T, D)
        x = x + mm(ctx, params['wo'][li]) + params['bo'][li]
        h2 = _layernorm(x, params['ln2_s'][li], params['ln2_b'][li])
        ff = _gelu(mm(h2, params['w1'][li]) + params['b1'][li])
        x = x + mm(ff, params['w2'][li]) + params['b2'][li]
    xf = _layernorm(x, params['lnf_s'], params['lnf_b'])
    return mm(xf, params['wout'])


# ----------------------------- main ------------------------------------------

if __name__ == "__main__":
    cfg = {
        'vocab_size': 64,
        'context_length': 16,
        'emb_dim': 32,
        'n_heads': 4,
        'n_layers': 2,
        'drop_rate': 0.0,      # dropout is identity
        'qkv_bias': False,
    }
    B, T = 2, 8

    root = jax.random.PRNGKey(0)
    k_param, k_idx = jax.random.split(root)
    params = init_params(k_param, cfg)
    in_idx = jax.random.randint(k_idx, (B, T), 0, cfg['vocab_size'], dtype=jnp.int32)

    logits = jax.block_until_ready(
        gpt_forward(in_idx, params, num_heads=cfg['n_heads']))
    ref = jax.block_until_ready(ref_forward(in_idx, params, cfg['n_heads']))

    assert logits.shape == (B, T, cfg['vocab_size'])
    max_err = float(jnp.max(jnp.abs(logits - ref)))
    # tolerance covers pl.reciprocal(approx=True) in the softmax denominator
    assert jnp.allclose(logits, ref, atol=2e-3, rtol=2e-2), max_err

    print("KERNEL_OK")
</pallas_src>

<mosaic_0001>
module attributes {stable_mosaic.version = 11 : i64} {
  func.func @lm_head_kernel(%arg0: i32, %arg1: i32, %arg2: i32, %arg3: memref<1x8x32xf32, #tpu.memory_space<vmem>>, %arg4: memref<32x64xbf16, #tpu.memory_space<vmem>>, %arg5: memref<1x8x64xf32, #tpu.memory_space<vmem>>) attributes {dimension_semantics = [#tpu.dimension_semantics<parallel>, #tpu.dimension_semantics<parallel>, #tpu.dimension_semantics<parallel>], iteration_bounds = array<i64: 2, 1, 1>, scalar_prefetch = 0 : i64, scratch_operands = 0 : i64, tpu.core_type = #tpu.core_type<tc>, window_params = [{transform_indices = @transform_0, window_bounds = array<i64: 1, 8, 32>}, {transform_indices = @transform_1, window_bounds = array<i64: 32, 64>}, {transform_indices = @transform_2, window_bounds = array<i64: 1, 8, 64>}]} {
    %c0 = arith.constant 0 : index
    %c0_0 = arith.constant 0 : index
    %c0_1 = arith.constant 0 : index
    %0 = vector.load %arg3[%c0, %c0_0, %c0_1] : memref<1x8x32xf32, #tpu.memory_space<vmem>>, vector<1x8x32xf32>
    %1 = vector.shape_cast %0 : vector<1x8x32xf32> to vector<8x32xf32>
    %2 = arith.truncf %1 : vector<8x32xf32> to vector<8x32xbf16>
    %c0_2 = arith.constant 0 : index
    %c0_3 = arith.constant 0 : index
    %3 = vector.load %arg4[%c0_2, %c0_3] : memref<32x64xbf16, #tpu.memory_space<vmem>>, vector<32x64xbf16>
    %cst = arith.constant dense<0.000000e+00> : vector<8x64xf32>
    %4 = tpu.matmul %2, %3, %cst {dimension_numbers = #tpu.dot_dimension_numbers<[1], [0], [0], [1], [0, 0, 1, 1], [], []>} : vector<8x32xbf16>, vector<32x64xbf16>, vector<8x64xf32> -> vector<8x64xf32>
    %c0_4 = arith.constant 0 : index
    %c0_5 = arith.constant 0 : index
    %c0_6 = arith.constant 0 : index
    %5 = vector.load %arg5[%c0_4, %c0_5, %c0_6] : memref<1x8x64xf32, #tpu.memory_space<vmem>>, vector<1x8x64xf32>
    %6 = vector.shape_cast %5 : vector<1x8x64xf32> to vector<8x64xf32>
    %7 = vector.shape_cast %4 : vector<8x64xf32> to vector<1x8x64xf32>
    tpu.vector_store %arg5[%c0_4, %c0_5, %c0_6], %7 {strides = array<i32>} : memref<1x8x64xf32, #tpu.memory_space<vmem>>, vector<1x8x64xf32>,
    return
  }
  func.func @transform_0(%arg0: i32, %arg1: i32, %arg2: i32) -> (i32, i32, i32) {
    %c0_i32 = arith.constant 0 : i32
    %c0_i32_0 = arith.constant 0 : i32
    return %arg0, %arg1, %c0_i32 : i32, i32, i32
  }
  func.func @transform_1(%arg0: i32, %arg1: i32, %arg2: i32) -> (i32, i32) {
    %c0_i32 = arith.constant 0 : i32
    %c0_i32_0 = arith.constant 0 : i32
    return %c0_i32, %arg2 : i32, i32
  }
  func.func @transform_2(%arg0: i32, %arg1: i32, %arg2: i32) -> (i32, i32, i32) {
    %c0_i32 = arith.constant 0 : i32
    return %arg0, %arg1, %arg2 : i32, i32, i32
  }
}

module attributes {stable_mosaic.version = 11 : i64} {
  func.func @gpt_blocks_kernel(%arg0: i32, %arg1: i32, %arg2: memref<1x8x32xf32, #tpu.memory_space<vmem>>, %arg3: memref<1x1x32xf32, #tpu.memory_space<vmem>>, %arg4: memref<1x1x32xf32, #tpu.memory_space<vmem>>, %arg5: memref<1x32x96xbf16, #tpu.memory_space<vmem>>, %arg6: memref<1x32x32xbf16, #tpu.memory_space<vmem>>, %arg7: memref<1x1x32xf32, #tpu.memory_space<vmem>>, %arg8: memref<1x1x32xf32, #tpu.memory_space<vmem>>, %arg9: memref<1x1x32xf32, #tpu.memory_space<vmem>>, %arg10: memref<1x32x128xbf16, #tpu.memory_space<vmem>>, %arg11: memref<1x1x128xf32, #tpu.memory_space<vmem>>, %arg12: memref<1x128x32xbf16, #tpu.memory_space<vmem>>, %arg13: memref<1x1x32xf32, #tpu.memory_space<vmem>>, %arg14: memref<1x32xf32, #tpu.memory_space<vmem>>, %arg15: memref<1x32xf32, #tpu.memory_space<vmem>>, %arg16: memref<1x8x32xf32, #tpu.memory_space<vmem>>) attributes {dimension_semantics = [#tpu.dimension_semantics<parallel>, #tpu.dimension_semantics<arbitrary>], iteration_bounds = array<i64: 2, 2>, scalar_prefetch = 0 : i64, scratch_operands = 0 : i64, tpu.core_type = #tpu.core_type<tc>, window_params = [{transform_indices = @transform_0, window_bounds = array<i64: 1, 8, 32>}, {transform_indices = @transform_1, window_bounds = array<i64: 1, 1, 32>}, {transform_indices = @transform_2, window_bounds = array<i64: 1, 1, 32>}, {transform_indices = @transform_3, window_bounds = array<i64: 1, 32, 96>}, {transform_indices = @transform_4, window_bounds = array<i64: 1, 32, 32>}, {transform_indices = @transform_5, window_bounds = array<i64: 1, 1, 32>}, {transform_indices = @transform_6, window_bounds = array<i64: 1, 1, 32>}, {transform_indices = @transform_7, window_bounds = array<i64: 1, 1, 32>}, {transform_indices = @transform_8, window_bounds = array<i64: 1, 32, 128>}, {transform_indices = @transform_9, window_bounds = array<i64: 1, 1, 128>}, {transform_indices = @transform_10, window_bounds = array<i64: 1, 128, 32>}, {transform_indices = @transform_11, window_bounds = array<i64: 1, 1, 32>}, {pipeline_mode = #tpu.pipeline_mode<synchronous>, transform_indices = @transform_12, window_bounds = array<i64: 1, 32>}, {pipeline_mode = #tpu.pipeline_mode<synchronous>, transform_indices = @transform_13, window_bounds = array<i64: 1, 32>}, {transform_indices = @transform_14, window_bounds = array<i64: 1, 8, 32>}]} {
    %c0_i32 = arith.constant 0 : i32
    %0 = arith.cmpi eq, %arg1, %c0_i32 : i32
    %1 = arith.extui %0 : i1 to i32
    %c0_i32_0 = arith.constant 0 : i32
    %2 = arith.cmpi ne, %1, %c0_i32_0 : i32
    scf.if %2 {
      %c0_61 = arith.constant 0 : index
      %c0_62 = arith.constant 0 : index
      %c0_63 = arith.constant 0 : index
      %137 = vector.load %arg2[%c0_61, %c0_62, %c0_63] : memref<1x8x32xf32, #tpu.memory_space<vmem>>, vector<1x8x32xf32>
      %138 = vector.shape_cast %137 : vector<1x8x32xf32> to vector<8x32xf32>
      %c0_64 = arith.constant 0 : index
      %c0_65 = arith.constant 0 : index
      %c0_66 = arith.constant 0 : index
      %139 = vector.load %arg16[%c0_64, %c0_65, %c0_66] : memref<1x8x32xf32, #tpu.memory_space<vmem>>, vector<1x8x32xf32>
      %140 = vector.shape_cast %139 : vector<1x8x32xf32> to vector<8x32xf32>
      %141 = vector.shape_cast %138 : vector<8x32xf32> to vector<1x8x32xf32>
      tpu.vector_store %arg16[%c0_64, %c0_65, %c0_66], %141 {strides = array<i32>} : memref<1x8x32xf32, #tpu.memory_space<vmem>>, vector<1x8x32xf32>,
    } else {
    }
    %c0 = arith.constant 0 : index
    %c0_1 = arith.constant 0 : index
    %c0_2 = arith.constant 0 : index
    %3 = vector.load %arg16[%c0, %c0_1, %c0_2] : memref<1x8x32xf32, #tpu.memory_space<vmem>>, vector<1x8x32xf32>
    %4 = vector.shape_cast %3 : vector<1x8x32xf32> to vector<8x32xf32>
    %c0_3 = arith.constant 0 : index
    %c0_4 = arith.constant 0 : index
    %c0_5 = arith.constant 0 : index
    %5 = vector.load %arg3[%c0_3, %c0_4, %c0_5] : memref<1x1x32xf32, #tpu.memory_space<vmem>>, vector<1x1x32xf32>
    %6 = vector.shape_cast %5 : vector<1x1x32xf32> to vector<1x32xf32>
    %c0_6 = arith.constant 0 : index
    %c0_7 = arith.constant 0 : index
    %c0_8 = arith.constant 0 : index
    %7 = vector.load %arg4[%c0_6, %c0_7, %c0_8] : memref<1x1x32xf32, #tpu.memory_space<vmem>>, vector<1x1x32xf32>
    %8 = vector.shape_cast %7 : vector<1x1x32xf32> to vector<1x32xf32>
    %cst = arith.constant dense<0.000000e+00> : vector<8xf32>
    %9 = vector.multi_reduction <add>, %4, %cst [1] : vector<8x32xf32> to vector<8xf32>
    %10 = vector.shape_cast %9 : vector<8xf32> to vector<8x1xf32>
    %cst_9 = arith.constant 3.200000e+01 : f32
    %11 = vector.broadcast %cst_9 : f32 to vector<8x1xf32>
    %12 = arith.divf %10, %11 : vector<8x1xf32>
    %13 = vector.broadcast %12 : vector<8x1xf32> to vector<8x32xf32>
    %14 = arith.subf %4, %13 : vector<8x32xf32>
    %15 = arith.mulf %14, %14 : vector<8x32xf32>
    %cst_10 = arith.constant dense<0.000000e+00> : vector<8xf32>
    %16 = vector.multi_reduction <add>, %15, %cst_10 [1] : vector<8x32xf32> to vector<8xf32>
    %17 = vector.shape_cast %16 : vector<8xf32> to vector<8x1xf32>
    %cst_11 = arith.constant 3.200000e+01 : f32
    %18 = vector.broadcast %cst_11 : f32 to vector<8x1xf32>
    %19 = arith.divf %17, %18 : vector<8x1xf32>
    %20 = vector.broadcast %12 : vector<8x1xf32> to vector<8x32xf32>
    %21 = arith.subf %4, %20 : vector<8x32xf32>
    %22 = vector.broadcast %6 : vector<1x32xf32> to vector<8x32xf32>
    %23 = arith.mulf %22, %21 : vector<8x32xf32>
    %cst_12 = arith.constant 9.99999974E-6 : f32
    %24 = vector.broadcast %cst_12 : f32 to vector<8x1xf32>
    %25 = arith.addf %19, %24 : vector<8x1xf32>
    %26 = math.rsqrt %25 : vector<8x1xf32>
    %27 = vector.broadcast %26 : vector<8x1xf32> to vector<8x32xf32>
    %28 = arith.mulf %23, %27 : vector<8x32xf32>
    %29 = vector.broadcast %8 : vector<1x32xf32> to vector<8x32xf32>
    %30 = arith.addf %28, %29 : vector<8x32xf32>
    %31 = arith.truncf %30 : vector<8x32xf32> to vector<8x32xbf16>
    %c0_13 = arith.constant 0 : index
    %c0_14 = arith.constant 0 : index
    %c0_15 = arith.constant 0 : index
    %32 = vector.load %arg5[%c0_13, %c0_14, %c0_15] : memref<1x32x96xbf16, #tpu.memory_space<vmem>>, vector<1x32x96xbf16>
    %33 = vector.shape_cast %32 : vector<1x32x96xbf16> to vector<32x96xbf16>
    %cst_16 = arith.constant dense<0.000000e+00> : vector<8x96xf32>
    %34 = tpu.matmul %31, %33, %cst_16 {dimension_numbers = #tpu.dot_dimension_numbers<[1], [0], [0], [1], [0, 0, 1, 1], [], []>} : vector<8x32xbf16>, vector<32x96xbf16>, vector<8x96xf32> -> vector<8x96xf32>
    %35 = vector.extract_strided_slice %34 {offsets = [0, 0], sizes = [8, 32], strides = [1, 1]} : vector<8x96xf32> to vector<8x32xf32>
    %36 = arith.truncf %35 : vector<8x32xf32> to vector<8x32xbf16>
    %37 = vector.shape_cast %36 : vector<8x32xbf16> to vector<8x4x8xbf16>
    %38 = vector.extract_strided_slice %34 {offsets = [0, 32], sizes = [8, 32], strides = [1, 1]} : vector<8x96xf32> to vector<8x32xf32>
    %39 = arith.truncf %38 : vector<8x32xf32> to vector<8x32xbf16>
    %40 = vector.shape_cast %39 : vector<8x32xbf16> to vector<8x4x8xbf16>
    %41 = vector.extract_strided_slice %34 {offsets = [0, 64], sizes = [8, 32], strides = [1, 1]} : vector<8x96xf32> to vector<8x32xf32>
    %42 = arith.truncf %41 : vector<8x32xf32> to vector<8x32xbf16>
    %43 = vector.shape_cast %42 : vector<8x32xbf16> to vector<8x4x8xbf16>
    "tpu.trace_start"() <{level = 10 : i32, message = "qhd,khd->hqk"}> : () -> ()
    %cst_17 = arith.constant dense<0.000000e+00> : vector<4x8x8xf32>
    %44 = tpu.matmul %37, %40, %cst_17 {dimension_numbers = #tpu.dot_dimension_numbers<[2], [2], [0], [0], [0, 1, 0, 0, 1, 0], [1], [1]>} : vector<8x4x8xbf16>, vector<8x4x8xbf16>, vector<4x8x8xf32> -> vector<4x8x8xf32>
    "tpu.trace_stop"() : () -> ()
    %45 = tpu.iota {dimensions = array<i32: 1>} : vector<1x8x8xi32>
    %46 = tpu.iota {dimensions = array<i32: 2>} : vector<1x8x8xi32>
    %47 = arith.cmpi sgt, %46, %45 : vector<1x8x8xi32>
    %cst_18 = arith.constant 0xFF800000 : f32
    %48 = vector.shape_cast %47 : vector<1x8x8xi1> to vector<1x8x8xi1>
    %49 = vector.broadcast %48 : vector<1x8x8xi1> to vector<4x8x8xi1>
    %50 = vector.broadcast %cst_18 : f32 to vector<4x8x8xf32>
    %51 = arith.select %49, %50, %44 : vector<4x8x8xi1>, vector<4x8x8xf32>
    %cst_19 = arith.constant dense<0xFF800000> : vector<4x8xf32>
    %52 = vector.multi_reduction <maximumf>, %51, %cst_19 [2] : vector<4x8x8xf32> to vector<4x8xf32>
    %53 = vector.shape_cast %52 : vector<4x8xf32> to vector<4x8x1xf32>
    %54 = vector.broadcast %53 : vector<4x8x1xf32> to vector<4x8x8xf32>
    %55 = arith.subf %51, %54 : vector<4x8x8xf32>
    %56 = math.exp %55 : vector<4x8x8xf32>
    %cst_20 = arith.constant dense<0.000000e+00> : vector<4x8xf32>
    %57 = vector.multi_reduction <add>, %56, %cst_20 [2] : vector<4x8x8xf32> to vector<4x8xf32>
    %58 = vector.shape_cast %57 : vector<4x8xf32> to vector<4x8x1xf32>
    %59 = tpu.reciprocal %58 {approx = true} : vector<4x8x1xf32> -> vector<4x8x1xf32>
    %60 = vector.broadcast %59 : vector<4x8x1xf32> to vector<4x8x8xf32>
    %61 = arith.mulf %56, %60 : vector<4x8x8xf32>
    %62 = arith.truncf %61 : vector<4x8x8xf32> to vector<4x8x8xbf16>
    "tpu.trace_start"() <{level = 10 : i32, message = "hqk,khd->qhd"}> : () -> ()
    %cst_21 = arith.constant dense<0.000000e+00> : vector<4x8x8xf32>
    %63 = tpu.matmul %43, %62, %cst_21 {dimension_numbers = #tpu.dot_dimension_numbers<[0], [2], [2], [1], [0, 1, 0, 2, 1, 1], [1], [0]>} : vector<8x4x8xbf16>, vector<4x8x8xbf16>, vector<4x8x8xf32> -> vector<4x8x8xf32>
    %64 = tpu.transpose %63, [2, 0, 1] : vector<4x8x8xf32> -> vector<8x4x8xf32>
    "tpu.trace_stop"() : () -> ()
    %65 = vector.shape_cast %64 : vector<8x4x8xf32> to vector<8x32xf32>
    %66 = arith.truncf %65 : vector<8x32xf32> to vector<8x32xbf16>
    %c0_22 = arith.constant 0 : index
    %c0_23 = arith.constant 0 : index
    %c0_24 = arith.constant 0 : index
    %67 = vector.load %arg6[%c0_22, %c0_23, %c0_24] : memref<1x32x32xbf16, #tpu.memory_space<vmem>>, vector<1x32x32xbf16>
    %68 = vector.shape_cast %67 : vector<1x32x32xbf16> to vector<32x32xbf16>
    %cst_25 = arith.constant dense<0.000000e+00> : vector<8x32xf32>
    %69 = tpu.matmul %66, %68, %cst_25 {dimension_numbers = #tpu.dot_dimension_numbers<[1], [0], [0], [1], [0, 0, 1, 1], [], []>} : vector<8x32xbf16>, vector<32x32xbf16>, vector<8x32xf32> -> vector<8x32xf32>
    %c0_26 = arith.constant 0 : index
    %c0_27 = arith.constant 0 : index
    %c0_28 = arith.constant 0 : index
    %70 = vector.load %arg7[%c0_26, %c0_27, %c0_28] : memref<1x1x32xf32, #tpu.memory_space<vmem>>, vector<1x1x32xf32>
    %71 = vector.shape_cast %70 : vector<1x1x32xf32> to vector<1x32xf32>
    %72 = vector.broadcast %71 : vector<1x32xf32> to vector<8x32xf32>
    %73 = arith.addf %69, %72 : vector<8x32xf32>
    %74 = arith.addf %4, %73 : vector<8x32xf32>
    %c0_29 = arith.constant 0 : index
    %c0_30 = arith.constant 0 : index
    %c0_31 = arith.constant 0 : index
    %75 = vector.load %arg8[%c0_29, %c0_30, %c0_31] : memref<1x1x32xf32, #tpu.memory_space<vmem>>, vector<1x1x32xf32>
    %76 = vector.shape_cast %75 : vector<1x1x32xf32> to vector<1x32xf32>
    %c0_32 = arith.constant 0 : index
    %c0_33 = arith.constant 0 : index
    %c0_34 = arith.constant 0 : index
    %77 = vector.load %arg9[%c0_32, %c0_33, %c0_34] : memref<1x1x32xf32, #tpu.memory_space<vmem>>, vector<1x1x32xf32>
    %78 = vector.shape_cast %77 : vector<1x1x32xf32> to vector<1x32xf32>
    %cst_35 = arith.constant dense<0.000000e+00> : vector<8xf32>
    %79 = vector.multi_reduction <add>, %74, %cst_35 [1] : vector<8x32xf32> to vector<8xf32>
    %80 = vector.shape_cast %79 : vector<8xf32> to vector<8x1xf32>
    %cst_36 = arith.constant 3.200000e+01 : f32
    %81 = vector.broadcast %cst_36 : f32 to vector<8x1xf32>
    %82 = arith.divf %80, %81 : vector<8x1xf32>
    %83 = vector.broadcast %82 : vector<8x1xf32> to vector<8x32xf32>
    %84 = arith.subf %74, %83 : vector<8x32xf32>
    %85 = arith.mulf %84, %84 : vector<8x32xf32>
    %cst_37 = arith.constant dense<0.000000e+00> : vector<8xf32>
    %86 = vector.multi_reduction <add>, %85, %cst_37 [1] : vector<8x32xf32> to vector<8xf32>
    %87 = vector.shape_cast %86 : vector<8xf32> to vector<8x1xf32>
    %cst_38 = arith.constant 3.200000e+01 : f32
    %88 = vector.broadcast %cst_38 : f32 to vector<8x1xf32>
    %89 = arith.divf %87, %88 : vector<8x1xf32>
    %90 = vector.broadcast %82 : vector<8x1xf32> to vector<8x32xf32>
    %91 = arith.subf %74, %90 : vector<8x32xf32>
    %92 = vector.broadcast %76 : vector<1x32xf32> to vector<8x32xf32>
    %93 = arith.mulf %92, %91 : vector<8x32xf32>
    %cst_39 = arith.constant 9.99999974E-6 : f32
    %94 = vector.broadcast %cst_39 : f32 to vector<8x1xf32>
    %95 = arith.addf %89, %94 : vector<8x1xf32>
    %96 = math.rsqrt %95 : vector<8x1xf32>
    %97 = vector.broadcast %96 : vector<8x1xf32> to vector<8x32xf32>
    %98 = arith.mulf %93, %97 : vector<8x32xf32>
    %99 = vector.broadcast %78 : vector<1x32xf32> to vector<8x32xf32>
    %100 = arith.addf %98, %99 : vector<8x32xf32>
    %101 = arith.truncf %100 : vector<8x32xf32> to vector<8x32xbf16>
    %c0_40 = arith.constant 0 : index
    %c0_41 = arith.constant 0 : index
    %c0_42 = arith.constant 0 : index
    %102 = vector.load %arg10[%c0_40, %c0_41, %c0_42] : memref<1x32x128xbf16, #tpu.memory_space<vmem>>, vector<1x32x128xbf16>
    %103 = vector.shape_cast %102 : vector<1x32x128xbf16> to vector<32x128xbf16>
    %cst_43 = arith.constant dense<0.000000e+00> : vector<8x128xf32>
    %104 = tpu.matmul %101, %103, %cst_43 {dimension_numbers = #tpu.dot_dimension_numbers<[1], [0], [0], [1], [0, 0, 1, 1], [], []>} : vector<8x32xbf16>, vector<32x128xbf16>, vector<8x128xf32> -> vector<8x128xf32>
    %c0_44 = arith.constant 0 : index
    %c0_45 = arith.constant 0 : index
    %c0_46 = arith.constant 0 : index
    %105 = vector.load %arg11[%c0_44, %c0_45, %c0_46] : memref<1x1x128xf32, #tpu.memory_space<vmem>>, vector<1x1x128xf32>
    %106 = vector.shape_cast %105 : vector<1x1x128xf32> to vector<1x128xf32>
    %107 = vector.broadcast %106 : vector<1x128xf32> to vector<8x128xf32>
    %108 = arith.addf %104, %107 : vector<8x128xf32>
    %cst_47 = arith.constant 5.000000e-01 : f32
    %109 = vector.broadcast %cst_47 : f32 to vector<8x128xf32>
    %110 = arith.mulf %109, %108 : vector<8x128xf32>
    %cst_48 = arith.constant 4.471500e-02 : f32
    %111 = vector.broadcast %cst_48 : f32 to vector<8x128xf32>
    %112 = arith.mulf %111, %108 : vector<8x128xf32>
    %113 = arith.mulf %112, %108 : vector<8x128xf32>
    %114 = arith.mulf %113, %108 : vector<8x128xf32>
    %115 = arith.addf %108, %114 : vector<8x128xf32>
    %cst_49 = arith.constant 0.797884583 : f32
    %116 = vector.broadcast %cst_49 : f32 to vector<8x128xf32>
    %117 = arith.mulf %116, %115 : vector<8x128xf32>
    %118 = math.tanh %117 : vector<8x128xf32>
    %cst_50 = arith.constant 1.000000e+00 : f32
    %119 = vector.broadcast %cst_50 : f32 to vector<8x128xf32>
    %120 = arith.addf %119, %118 : vector<8x128xf32>
    %121 = arith.mulf %110, %120 : vector<8x128xf32>
    %122 = arith.truncf %121 : vector<8x128xf32> to vector<8x128xbf16>
    %c0_51 = arith.constant 0 : index
    %c0_52 = arith.constant 0 : index
    %c0_53 = arith.constant 0 : index
    %123 = vector.load %arg12[%c0_51, %c0_52, %c0_53] : memref<1x128x32xbf16, #tpu.memory_space<vmem>>, vector<1x128x32xbf16>
    %124 = vector.shape_cast %123 : vector<1x128x32xbf16> to vector<128x32xbf16>
    %cst_54 = arith.constant dense<0.000000e+00> : vector<8x32xf32>
    %125 = tpu.matmul %122, %124, %cst_54 {dimension_numbers = #tpu.dot_dimension_numbers<[1], [0], [0], [1], [0, 0, 1, 1], [], []>} : vector<8x128xbf16>, vector<128x32xbf16>, vector<8x32xf32> -> vector<8x32xf32>
    %126 = arith.addf %74, %125 : vector<8x32xf32>
    %c0_55 = arith.constant 0 : index
    %c0_56 = arith.constant 0 : index
    %c0_57 = arith.constant 0 : index
    %127 = vector.load %arg13[%c0_55, %c0_56, %c0_57] : memref<1x1x32xf32, #tpu.memory_space<vmem>>, vector<1x1x32xf32>
    %128 = vector.shape_cast %127 : vector<1x1x32xf32> to vector<1x32xf32>
    %129 = vector.broadcast %128 : vector<1x32xf32> to vector<8x32xf32>
    %130 = arith.addf %126, %129 : vector<8x32xf32>
    %c1_i32 = arith.constant 1 : i32
    %131 = arith.cmpi slt, %arg1, %c1_i32 : i32
    %132 = arith.extui %131 : i1 to i32
    %c0_i32_58 = arith.constant 0 : i32
    %133 = arith.cmpi ne, %132, %c0_i32_58 : i32
    scf.if %133 {
      %c0_61 = arith.constant 0 : index
      %c0_62 = arith.constant 0 : index
      %c0_63 = arith.constant 0 : index
      %137 = vector.load %arg16[%c0_61, %c0_62, %c0_63] : memref<1x8x32xf32, #tpu.memory_space<vmem>>, vector<1x8x32xf32>
      %138 = vector.shape_cast %137 : vector<1x8x32xf32> to vector<8x32xf32>
      %139 = vector.shape_cast %130 : vector<8x32xf32> to vector<1x8x32xf32>
      tpu.vector_store %arg16[%c0_61, %c0_62, %c0_63], %139 {strides = array<i32>} : memref<1x8x32xf32, #tpu.memory_space<vmem>>, vector<1x8x32xf32>,
    } else {
    }
    %c1_i32_59 = arith.constant 1 : i32
    %134 = arith.cmpi eq, %arg1, %c1_i32_59 : i32
    %135 = arith.extui %134 : i1 to i32
    %c0_i32_60 = arith.constant 0 : i32
    %136 = arith.cmpi ne, %135, %c0_i32_60 : i32
    scf.if %136 {
      %c0_61 = arith.constant 0 : index
      %c0_62 = arith.constant 0 : index
      %137 = vector.load %arg14[%c0_61, %c0_62] : memref<1x32xf32, #tpu.memory_space<vmem>>, vector<1x32xf32>
      %c0_63 = arith.constant 0 : index
      %c0_64 = arith.constant 0 : index
      %138 = vector.load %arg15[%c0_63, %c0_64] : memref<1x32xf32, #tpu.memory_space<vmem>>, vector<1x32xf32>
      %cst_65 = arith.constant dense<0.000000e+00> : vector<8xf32>
      %139 = vector.multi_reduction <add>, %130, %cst_65 [1] : vector<8x32xf32> to vector<8xf32>
      %140 = vector.shape_cast %139 : vector<8xf32> to vector<8x1xf32>
      %cst_66 = arith.constant 3.200000e+01 : f32
      %141 = vector.broadcast %cst_66 : f32 to vector<8x1xf32>
      %142 = arith.divf %140, %141 : vector<8x1xf32>
      %143 = vector.broadcast %142 : vector<8x1xf32> to vector<8x32xf32>
      %144 = arith.subf %130, %143 : vector<8x32xf32>
      %145 = arith.mulf %144, %144 : vector<8x32xf32>
      %cst_67 = arith.constant dense<0.000000e+00> : vector<8xf32>
      %146 = vector.multi_reduction <add>, %145, %cst_67 [1] : vector<8x32xf32> to vector<8xf32>
      %147 = vector.shape_cast %146 : vector<8xf32> to vector<8x1xf32>
      %cst_68 = arith.constant 3.200000e+01 : f32
      %148 = vector.broadcast %cst_68 : f32 to vector<8x1xf32>
      %149 = arith.divf %147, %148 : vector<8x1xf32>
      %150 = vector.broadcast %142 : vector<8x1xf32> to vector<8x32xf32>
      %151 = arith.subf %130, %150 : vector<8x32xf32>
      %152 = vector.broadcast %137 : vector<1x32xf32> to vector<8x32xf32>
      %153 = arith.mulf %152, %151 : vector<8x32xf32>
      %cst_69 = arith.constant 9.99999974E-6 : f32
      %154 = vector.broadcast %cst_69 : f32 to vector<8x1xf32>
      %155 = arith.addf %149, %154 : vector<8x1xf32>
      %156 = math.rsqrt %155 : vector<8x1xf32>
      %157 = vector.broadcast %156 : vector<8x1xf32> to vector<8x32xf32>
      %158 = arith.mulf %153, %157 : vector<8x32xf32>
      %159 = vector.broadcast %138 : vector<1x32xf32> to vector<8x32xf32>
      %160 = arith.addf %158, %159 : vector<8x32xf32>
      %c0_70 = arith.constant 0 : index
      %c0_71 = arith.constant 0 : index
      %c0_72 = arith.constant 0 : index
      %161 = vector.load %arg16[%c0_70, %c0_71, %c0_72] : memref<1x8x32xf32, #tpu.memory_space<vmem>>, vector<1x8x32xf32>
      %162 = vector.shape_cast %161 : vector<1x8x32xf32> to vector<8x32xf32>
      %163 = vector.shape_cast %160 : vector<8x32xf32> to vector<1x8x32xf32>
      tpu.vector_store %arg16[%c0_70, %c0_71, %c0_72], %163 {strides = array<i32>} : memref<1x8x32xf32, #tpu.memory_space<vmem>>, vector<1x8x32xf32>,
    } else {
    }
    return
  }
  func.func @transform_0(%arg0: i32, %arg1: i32) -> (i32, i32, i32) {
    %c0_i32 = arith.constant 0 : i32
    %c0_i32_0 = arith.constant 0 : i32
    %c0_i32_1 = arith.constant 0 : i32
    return %arg0, %c0_i32, %c0_i32_0 : i32, i32, i32
  }
  func.func @transform_1(%arg0: i32, %arg1: i32) -> (i32, i32, i32) {
    %c0_i32 = arith.constant 0 : i32
    %c0_i32_0 = arith.constant 0 : i32
    %c0_i32_1 = arith.constant 0 : i32
    return %arg1, %c0_i32, %c0_i32_0 : i32, i32, i32
  }
  func.func @transform_2(%arg0: i32, %arg1: i32) -> (i32, i32, i32) {
    %c0_i32 = arith.constant 0 : i32
    %c0_i32_0 = arith.constant 0 : i32
    %c0_i32_1 = arith.constant 0 : i32
    return %arg1, %c0_i32, %c0_i32_0 : i32, i32, i32
  }
  func.func @transform_3(%arg0: i32, %arg1: i32) -> (i32, i32, i32) {
    %c0_i32 = arith.constant 0 : i32
    %c0_i32_0 = arith.constant 0 : i32
    %c0_i32_1 = arith.constant 0 : i32
    return %arg1, %c0_i32, %c0_i32_0 : i32, i32, i32
  }
  func.func @transform_4(%arg0: i32, %arg1: i32) -> (i32, i32, i32) {
    %c0_i32 = arith.constant 0 : i32
    %c0_i32_0 = arith.constant 0 : i32
    %c0_i32_1 = arith.constant 0 : i32
    return %arg1, %c0_i32, %c0_i32_0 : i32, i32, i32
  }
  func.func @transform_5(%arg0: i32, %arg1: i32) -> (i32, i32, i32) {
    %c0_i32 = arith.constant 0 : i32
    %c0_i32_0 = arith.constant 0 : i32
    %c0_i32_1 = arith.constant 0 : i32
    return %arg1, %c0_i32, %c0_i32_0 : i32, i32, i32
  }
  func.func @transform_6(%arg0: i32, %arg1: i32) -> (i32, i32, i32) {
    %c0_i32 = arith.constant 0 : i32
    %c0_i32_0 = arith.constant 0 : i32
    %c0_i32_1 = arith.constant 0 : i32
    return %arg1, %c0_i32, %c0_i32_0 : i32, i32, i32
  }
  func.func @transform_7(%arg0: i32, %arg1: i32) -> (i32, i32, i32) {
    %c0_i32 = arith.constant 0 : i32
    %c0_i32_0 = arith.constant 0 : i32
    %c0_i32_1 = arith.constant 0 : i32
    return %arg1, %c0_i32, %c0_i32_0 : i32, i32, i32
  }
  func.func @transform_8(%arg0: i32, %arg1: i32) -> (i32, i32, i32) {
    %c0_i32 = arith.constant 0 : i32
    %c0_i32_0 = arith.constant 0 : i32
    %c0_i32_1 = arith.constant 0 : i32
    return %arg1, %c0_i32, %c0_i32_0 : i32, i32, i32
  }
  func.func @transform_9(%arg0: i32, %arg1: i32) -> (i32, i32, i32) {
    %c0_i32 = arith.constant 0 : i32
    %c0_i32_0 = arith.constant 0 : i32
    %c0_i32_1 = arith.constant 0 : i32
    return %arg1, %c0_i32, %c0_i32_0 : i32, i32, i32
  }
  func.func @transform_10(%arg0: i32, %arg1: i32) -> (i32, i32, i32) {
    %c0_i32 = arith.constant 0 : i32
    %c0_i32_0 = arith.constant 0 : i32
    %c0_i32_1 = arith.constant 0 : i32
    return %arg1, %c0_i32, %c0_i32_0 : i32, i32, i32
  }
  func.func @transform_11(%arg0: i32, %arg1: i32) -> (i32, i32, i32) {
    %c0_i32 = arith.constant 0 : i32
    %c0_i32_0 = arith.constant 0 : i32
    %c0_i32_1 = arith.constant 0 : i32
    return %arg1, %c0_i32, %c0_i32_0 : i32, i32, i32
  }
  func.func @transform_12(%arg0: i32, %arg1: i32) -> (i32, i32) {
    %c0_i32 = arith.constant 0 : i32
    %c0_i32_0 = arith.constant 0 : i32
    %c0_i32_1 = arith.constant 0 : i32
    return %c0_i32, %c0_i32_0 : i32, i32
  }
  func.func @transform_13(%arg0: i32, %arg1: i32) -> (i32, i32) {
    %c0_i32 = arith.constant 0 : i32
    %c0_i32_0 = arith.constant 0 : i32
    %c0_i32_1 = arith.constant 0 : i32
    return %c0_i32, %c0_i32_0 : i32, i32
  }
  func.func @transform_14(%arg0: i32, %arg1: i32) -> (i32, i32, i32) {
    %c0_i32 = arith.constant 0 : i32
    %c0_i32_0 = arith.constant 0 : i32
    %c0_i32_1 = arith.constant 0 : i32
    return %arg0, %c0_i32, %c0_i32_0 : i32, i32, i32
  }
}

</mosaic_0001>

<llo_original>
// kernel: gpt_forward.3
$region0: #{gpt_forward.3}
  #allocation0 [shape = 'u32[]', space=smem, size = 0x4, offset = 0x4, fixed_abs, tag = 'smem constant byte address 0x4 - core index']
  #allocation1 [shape = 'u32[144,128]{1,0:T(1,128)}', space=vmem, size = 0x12000, scoped, tag = 'internal scratch']
  %s0 = inlined_call_operand.vmem [shape: f32[2,8,32], index: 0, kind: input, shape index: {}]
  %s1 = inlined_call_operand.vmem [shape: bf16[32,64], index: 1, kind: input, shape index: {}]
  %s2 = inlined_call_operand.hbm [shape: f32[2,8,64], index: 2, kind: output, shape index: {}]
  %s3 = sld [smem:[#allocation0]]
  $region41: #{gpt_forward.3} parent=0
    _
  %s5 = ssub.s32 1, %s3
  %s6 = scalar_select 0, %s5, %s3
  $region1: #{gpt_forward.3} parent=0
    #allocation2 [shape = 'u8[8192]{0}', space=vmem, size = 0x2000, scoped, tag = 'output window, operand 0']
    #allocation3 [shape = 's32[2]{0}', space=sflag, size = 0x8, scoped, tag = 'scoped memory for gpt_forward.3']
    %7 = vsyncpa [#allocation3], 0
    %s8 = scalar_lea.sflag [#allocation3], 1
    %9 = vsyncpa %s8, 0
    loop: start=0, step=1, limit=4
    $region2: #{gpt_forward.3} parent=1 // loop_pre_header
      _
    $region3: #{gpt_forward.3} parent=1 // loop_header
      %s11 = sphi 0, %s15
      %p12 = scmp.ge.s32.totalorder %s11, 4
      %s18 = sphi 0, %s37
      %s19 = sphi 0, %s33
      %s20 = sphi 0, %s29
      %s21 = sphi 0, %s18
      %s22 = sphi 0, %s19
      %s23 = sphi 0, %s20
      %s24 = sphi 0, %s21
      %s25 = sphi 0, %s22
      %s26 = sphi 0, %s23
      %s42 = sphi 0, %s44
      %s45 = sphi 0, %s42
      %s46 = sphi 0, %s45
      %s62 = sphi 0, %s46
      %s68 = sphi 0, %s70
      %s71 = sphi 0, %s68
      %s72 = sphi 0, %s71
      %s88 = sphi 0, %s72
      %s98 = sphi 0, %s100
      %s101 = sphi 0, %s98
      %s102 = sphi 0, %s101
      %s118 = sphi 0, %s102
    $region4: #{gpt_forward.3} parent=1 // loop_header_branch
      %14 = sbr.rel (%p12) target = $region8
    $region5: #{gpt_forward.3} parent=1 // loop_body
      %s16 = ssub.s32 %s11, 1
      %s17 = ssub.s32 %s11, 2
      %s27 = sadd.s32 1, %s20
      %p28 = scmp.ge.s32.totalorder %s27, 1
      %s29 = scalar_select %p28, 0, %s27
      %s30 = sadd.s32 1, %s19
      %s31 = scalar_select %p28, %s30, %s19
      %p32 = scmp.ge.s32.totalorder %s31, 1
      %s33 = scalar_select %p32, 0, %s31
      %s34 = sadd.s32 1, %s18
      %s35 = scalar_select %p32, %s34, %s18
      %p36 = scmp.ge.s32.totalorder %s35, 2
      %s37 = scalar_select %p36, 0, %s35
      %s38 = ssub.s32 %s18, %s37
      %s39 = ssub.s32 %s19, %s33
      %s40 = sor.u32 %s38, %s39
      %p41 = scmp.eq.s32.totalorder %s40, 0
      %s43 = sadd.s32 %s42, 1
      %s44 = scalar_select %p41, %s42, %s43
      %p47 = pneg %p41
      %p48 = scmp.eq.s32.totalorder %s11, 1
      %p49 = por %p47, %p48
      %p50 = scmp.ne.s32.totalorder %s42, %s45
      %p51 = scmp.eq.s32.totalorder %s11, 0
      %p52 = por %p50, %p51
      %p53 = scmp.ne.s32.totalorder %s42, %s45
      %p54 = scmp.eq.s32.totalorder %s16, 1
      %p55 = por %p53, %p54
      %p56 = scmp.ne.s32.totalorder %s45, %s46
      %p57 = scmp.eq.s32.totalorder %s16, 0
      %p58 = por %p56, %p57
      %p59 = scmp.ne.s32.totalorder %s45, %s46
      %p60 = scmp.eq.s32.totalorder %s17, 1
      %p61 = por %p59, %p60
      %p63 = scmp.ne.s32.totalorder %s46, %s62
      %p64 = scmp.eq.s32.totalorder %s17, 0
      %p65 = por %p63, %p64
      %s66 = ssub.s32 %s20, %s29
      %p67 = scmp.eq.s32.totalorder %s66, 0
      %s69 = sadd.s32 %s68, 1
      %s70 = scalar_select %p67, %s68, %s69
      %p73 = pneg %p67
      %p74 = scmp.eq.s32.totalorder %s11, 1
      %p75 = por %p73, %p74
      %p76 = scmp.ne.s32.totalorder %s68, %s71
      %p77 = scmp.eq.s32.totalorder %s11, 0
      %p78 = por %p76, %p77
      %p79 = scmp.ne.s32.totalorder %s68, %s71
      %p80 = scmp.eq.s32.totalorder %s16, 1
      %p81 = por %p79, %p80
      %p82 = scmp.ne.s32.totalorder %s71, %s72
      %p83 = scmp.eq.s32.totalorder %s16, 0
      %p84 = por %p82, %p83
      %p85 = scmp.ne.s32.totalorder %s71, %s72
      %p86 = scmp.eq.s32.totalorder %s17, 1
      %p87 = por %p85, %p86
      %p89 = scmp.ne.s32.totalorder %s72, %s88
      %p90 = scmp.eq.s32.totalorder %s17, 0
      %p91 = por %p89, %p90
      %s92 = ssub.s32 %s18, %s37
      %s93 = ssub.s32 %s19, %s33
      %s94 = sor.u32 %s92, %s93
      %s95 = ssub.s32 %s20, %s29
      %s96 = sor.u32 %s94, %s95
      %p97 = scmp.eq.s32.totalorder %s96, 0
      %s99 = sadd.s32 %s98, 1
      %s100 = scalar_select %p97, %s98, %s99
      %p103 = pneg %p97
      %p104 = scmp.eq.s32.totalorder %s11, 1
      %p105 = por %p103, %p104
      %p106 = scmp.ne.s32.totalorder %s98, %s101
      %p107 = scmp.eq.s32.totalorder %s11, 0
      %p108 = por %p106, %p107
      %p109 = scmp.ne.s32.totalorder %s98, %s101
      %p110 = scmp.eq.s32.totalorder %s16, 1
      %p111 = por %p109, %p110
      %p112 = scmp.ne.s32.totalorder %s101, %s102
      %p113 = scmp.eq.s32.totalorder %s16, 0
      %p114 = por %p112, %p113
      %p115 = scmp.ne.s32.totalorder %s101, %s102
      %p116 = scmp.eq.s32.totalorder %s17, 1
      %p117 = por %p115, %p116
      %p119 = scmp.ne.s32.totalorder %s102, %s118
      %p120 = scmp.eq.s32.totalorder %s17, 0
      %p121 = por %p119, %p120
      %p122 = scmp.le.s32.totalorder 1, %s11
      %p123 = scmp.lt.s32.totalorder %s11, 3
      %p124 = pnand %p122, %p123
      %p125 = pneg %p124
      // Predicated region
      $region9: #{gpt_forward.3} parent=5 // pred_check
        _
      $region10: #{gpt_forward.3} parent=5 // pred_check_branch
        %127 = sbr.rel (%p124) target = $region12
      $region11: #{gpt_forward.3} parent=5 // pred_region
        %s128 = ssub.s32 %s11, 1
        // Predicated region
        $region13: #{gpt_forward.3} parent=11 // pred_check
          %p129 = pneg %p84
        $region14: #{gpt_forward.3} parent=11 // pred_check_branch
          %131 = sbr.rel (%p129) target = $region16
        $region15: #{gpt_forward.3} parent=11 // pred_region
          %p132 = scmp.lt.s32.totalorder %s23, 0
          %s133 = scalar_select %p132, %s23, 0
          %s134 = smul.addr %s133, 4
          %s135 = scalar_lea.vmem %s1, %s134
        $region16: #{gpt_forward.3} parent=11 // pred_fallthru
          _
      $region12: #{gpt_forward.3} parent=5 // pred_fallthru
        _
      %p136 = scmp.lt.s32.totalorder %s11, 2
      // Predicated region
      $region17: #{gpt_forward.3} parent=5 // pred_check
        %p137 = pneg %p136
      $region18: #{gpt_forward.3} parent=5 // pred_check_branch
        %139 = sbr.rel (%p137) target = $region20
      $region19: #{gpt_forward.3} parent=5 // pred_region
        // Predicated region
        $region21: #{gpt_forward.3} parent=19 // pred_check
          %p140 = pneg %p52
        $region22: #{gpt_forward.3} parent=19 // pred_check_branch
          %142 = sbr.rel (%p140) target = $region24
        $region23: #{gpt_forward.3} parent=19 // pred_region
          %p143 = scmp.lt.s32.totalorder %s18, 1
          %s144 = scalar_select %p143, %s18, 1
          %p145 = scmp.lt.s32.totalorder %s19, 0
          %s146 = scalar_select %p145, %s19, 0
          %s147 = sadd.s32 %s146, %s144
          %s148 = smul.addr %s147, 8
          %s149 = scalar_lea.vmem %s0, %s148
        $region24: #{gpt_forward.3} parent=19 // pred_fallthru
          _
      $region20: #{gpt_forward.3} parent=5 // pred_fallthru
        _
      %p150 = scmp.le.s32.totalorder 1, %s11
      %p151 = scmp.lt.s32.totalorder %s11, 3
      %p152 = pnand %p150, %p151
      %p153 = pneg %p152
      // Predicated region
      $region25: #{gpt_forward.3} parent=5 // pred_check
        _
      $region26: #{gpt_forward.3} parent=5 // pred_check_branch
        %155 = sbr.rel (%p152) target = $region28
      $region27: #{gpt_forward.3} parent=5 // pred_region
        %s156 = ssub.s32 %s11, 1
        %p157 = scmp.lt.s32.totalorder %s21, 1
        %s158 = scalar_select %p157, %s21, 1
        %p159 = scmp.lt.s32.totalorder %s22, 0
        %s160 = scalar_select %p159, %s22, 0
        %s161 = sadd.s32 %s160, %s158
        %s162 = smul.addr %s161, 8
        %s163 = scalar_lea.vmem %s0, %s162
        %p164 = pneg %p58
        %p165 = pneg %p55
        %p166 = scmp.lt.s32.totalorder %s23, 0
        %s167 = scalar_select %p166, %s23, 0
        %s168 = smul.addr %s167, 4
        %s169 = scalar_lea.vmem %s1, %s168
        %p170 = pneg %p84
        %p171 = pneg %p81
        %p172 = pneg %p114
        %p173 = pneg %p111
        %s174 = sand.u32 %s101, 1
        %s175 = scalar_lea.sflag [#allocation3], %s174
        %s176 = sand.u32 %s101, 1
        %s177 = smul.addr %s176, 8
        %s178 = scalar_lea.vmem [#allocation2], %s177
        %p179 = scmp.lt.s32.totalorder %s21, 1
        %s180 = scalar_select %p179, %s21, 1
        %p181 = scmp.lt.s32.totalorder %s22, 0
        %s182 = scalar_select %p181, %s22, 0
        %s183 = sadd.s32 %s182, %s180
        %s184 = smul.addr %s183, 8
        %s185 = scalar_lea.vmem %s0, %s184
        %p186 = scmp.lt.s32.totalorder %s23, 0
        %s187 = scalar_select %p186, %s23, 0
        %s188 = smul.addr %s187, 4
        %s189 = scalar_lea.vmem %s1, %s188
        %v191 = vld [vmem:[%s185] sm:$0xff]
        %v192 = vpack.c.bf16 %v191, %v191
        %v193 = vld [vmem:[%s189] sm:$0xf]
        %v194 = vld [vmem:[%s189 + $0x4] sm:$0xf]
        %v195 = vld [vmem:[%s189 + $0x8] sm:$0xf]
        %v196 = vld [vmem:[%s189 + $0xc] sm:$0xf]
        %v201 = vunpack.c.l.b16 %v193
        %v202 = vunpack.c.l.b16 %v194
        %v203 = vunpack.c.l.b16 %v195
        %v204 = vunpack.c.l.b16 %v196
        %v205 = vpack.c.b16 %v202, %v201
        %v206 = vpack.c.b16 %v204, %v203
        %vm209 = vcmask 261120
        %v211 = vsel %vm209, %v192, 0
        %213 = vmatprep.subr.bf16.mxu0 0
        %214 = vmatpush1.bf16.msra.mxu0 0
        %215 = vmatprep.subr.bf16.mxu0 0
        %216 = vmatpush1.bf16.msra.mxu0 0
        %217 = vmatprep.subr.bf16.mxu0 0
        %218 = vmatpush1.bf16.msra.mxu0 0
        %219 = vmatprep.subr.bf16.mxu0 0
        %220 = vmatpush1.bf16.msra.mxu0 0
        %221 = vmatprep.subr.bf16.mxu0 0
        %222 = vmatpush1.bf16.msra.mxu0 0
        %223 = vmatprep.subr.bf16.mxu0 0
        %224 = vmatpush1.bf16.msra.mxu0 0
        %225 = vmatprep.subr.bf16.mxu0 0
        %226 = vmatpush1.bf16.msra.mxu0 %v206
        %227 = vmatprep.subr.bf16.mxu0 0
        %228 = vmatpush1.bf16.msra.mxu0 %v205
        %229 = vmatprep.subr.bf16.mxu0 0
        %230 = vmatpush2.bf16.msra.mxu0 0
        %231 = vmatprep.subr.bf16.mxu0 0
        %232 = vmatpush2.bf16.msra.mxu0 0
        %233 = vmatprep.subr.bf16.mxu0 0
        %234 = vmatpush2.bf16.msra.mxu0 0
        %235 = vmatprep.subr.bf16.mxu0 0
        %236 = vmatpush2.bf16.msra.mxu0 0
        %237 = vmatprep.subr.bf16.mxu0 0
        %238 = vmatpush2.bf16.msra.mxu0 0
        %239 = vmatprep.subr.bf16.mxu0 0
        %240 = vmatpush2.bf16.msra.mxu0 0
        %241 = vmatprep.subr.bf16.mxu0 0
        %242 = vmatpush2.bf16.msra.mxu0 0
        %243 = vmatprep.subr.bf16.mxu0 0
        %244 = vmatpush2.bf16.msra.mxu0 0
        %245 = vmatprep.mubr.bf16.mxu0 0
        %246 = vmatmul.mubr.bf16.gmra.mxu0 %v211
        %v247 = vpop.f32.mrf.mxu0
        %v248 = vadd.f32 0.0, %v247
        %v249 = vpop.f32.mrf.mxu0
        %v250 = vpop.f32.mrf.mxu0
        %v251 = vpop.f32.mrf.mxu0
        %252 = vdwg.mxu0
        %vm253 = vcmask 523264
        %254 = vst.msk [vmem:[%s178] sm:$0xff] %vm253, %v248
        %s255 = sand.u32 %s101, 1
        %s256 = scalar_lea.sflag [#allocation3], %s255
        %s257 = sand.u32 %s101, 1
        %s258 = smul.addr %s257, 8
        %s259 = scalar_lea.vmem [#allocation2], %s258
        // Predicated region
        $region29: #{gpt_forward.3} parent=27 // pred_check
          %p260 = pneg %p111
        $region30: #{gpt_forward.3} parent=27 // pred_check_branch
          %262 = sbr.rel (%p260) target = $region32
        $region31: #{gpt_forward.3} parent=27 // pred_region
          %s264 = ssub.s32 128, 128
          %265 = vsyncadd %s256, %s264
          %s266 = sadd.s32 %s23, %s22
          %s267 = sadd.s32 %s266, %s21
          %s268 = smul.addr %s267, 128
          %s269 = scalar_lea.hbm %s2, %s268
          %s271 = sshll.u32 %s259, 4
          %s272 = int_to_ptr.vmem [resolvable:$true] %s271
          %274 = dma.vmem_to_hbm [thread:$0]  %s272, 128, %s269, %s256
        $region32: #{gpt_forward.3} parent=27 // pred_fallthru
          _
      $region28: #{gpt_forward.3} parent=5 // pred_fallthru
        _
      %p275 = scmp.le.s32.totalorder 2, %s11
      // Predicated region
      $region33: #{gpt_forward.3} parent=5 // pred_check
        %p276 = pneg %p275
      $region34: #{gpt_forward.3} parent=5 // pred_check_branch
        %278 = sbr.rel (%p276) target = $region36
      $region35: #{gpt_forward.3} parent=5 // pred_region
        %s279 = ssub.s32 %s11, 2
        // Predicated region
        $region37: #{gpt_forward.3} parent=35 // pred_check
          %p280 = pneg %p117
        $region38: #{gpt_forward.3} parent=35 // pred_check_branch
          %282 = sbr.rel (%p280) target = $region40
        $region39: #{gpt_forward.3} parent=35 // pred_region
          %s283 = sand.u32 %s102, 1
          %s284 = scalar_lea.sflag [#allocation3], %s283
          %s285 = sand.u32 %s102, 1
          %s286 = smul.addr %s285, 8
          %s287 = scalar_lea.vmem [#allocation2], %s286
          %288 = dma.done %s284, 128
        $region40: #{gpt_forward.3} parent=35 // pred_fallthru
          _
      $region36: #{gpt_forward.3} parent=5 // pred_fallthru
        _
    $region6: #{gpt_forward.3} parent=1 // loop_footer
      %s15 = sadd.s32 1, %s11
    $region7: #{gpt_forward.3} parent=1 // loop_footer_branch
      %10 = sbr.rel target = $region3
    $region8: #{gpt_forward.3} parent=1 // loop_exit
      _
    %289 = vsyncpa [#allocation3], 1
    %s290 = scalar_lea.sflag [#allocation3], 1
    %291 = vsyncpa %s290, 1

// kernel: gpt_forward.2
$region0: #{gpt_forward.2}
  #allocation0 [shape = 'u32[]', space=smem, size = 0x4, offset = 0x4, fixed_abs, tag = 'smem constant byte address 0x4 - core index']
  #allocation1 [shape = 'u32[144,128]{1,0:T(1,128)}', space=vmem, size = 0x12000, scoped, tag = 'internal scratch']
  %s0 = inlined_call_operand.vmem [shape: f32[2,8,32], index: 0, kind: input, shape index: {}, may-alias: {0,14}]
  %s1 = inlined_call_operand.vmem [shape: f32[2,1,32], index: 1, kind: input, shape index: {}]
  %s2 = inlined_call_operand.vmem [shape: f32[2,1,32], index: 2, kind: input, shape index: {}]
  %s3 = inlined_call_operand.vmem [shape: bf16[2,32,96], index: 3, kind: input, shape index: {}]
  %s4 = inlined_call_operand.vmem [shape: bf16[2,32,32], index: 4, kind: input, shape index: {}]
  %s5 = inlined_call_operand.vmem [shape: f32[2,1,32], index: 5, kind: input, shape index: {}]
  %s6 = inlined_call_operand.vmem [shape: f32[2,1,32], index: 6, kind: input, shape index: {}]
  %s7 = inlined_call_operand.vmem [shape: f32[2,1,32], index: 7, kind: input, shape index: {}]
  %s8 = inlined_call_operand.vmem [shape: bf16[2,32,128], index: 8, kind: input, shape index: {}]
  %s9 = inlined_call_operand.vmem [shape: f32[2,1,128], index: 9, kind: input, shape index: {}]
  %s10 = inlined_call_operand.vmem [shape: bf16[2,128,32], index: 10, kind: input, shape index: {}]
  %s11 = inlined_call_operand.vmem [shape: f32[2,1,32], index: 11, kind: input, shape index: {}]
  %s12 = inlined_call_operand.vmem [shape: f32[1,32], index: 12, kind: input, shape index: {}]
  %s13 = inlined_call_operand.vmem [shape: f32[1,32], index: 13, kind: input, shape index: {}]
  %s14 = inlined_call_operand.vmem [shape: f32[2,8,32], index: 14, kind: output, shape index: {}, may-alias: {0,14}]
  %s15 = sld [smem:[#allocation0]]
  $region101: #{gpt_forward.2} parent=0
    _
  %s17 = ssub.s32 1, %s15
  %s18 = scalar_select 0, %s17, %s15
  loop: start=0, step=1, limit=6
  $region2: #{gpt_forward.2} parent=0 // loop_pre_header
    _
  $region3: #{gpt_forward.2} parent=0 // loop_header
    %s20 = sphi 0, %s24
    %p21 = scmp.ge.s32.totalorder %s20, 6
    %s27 = sphi 0, %s39
    %s28 = sphi 0, %s35
    %s29 = sphi 0, %s27
    %s30 = sphi 0, %s28
    %s31 = sphi 0, %s29
    %s32 = sphi 0, %s30
    %s42 = sphi 0, %s44
    %s45 = sphi 0, %s42
    %s46 = sphi 0, %s45
    %s62 = sphi 0, %s46
    %s68 = sphi 0, %s70
    %s71 = sphi 0, %s68
    %s72 = sphi 0, %s71
    %s88 = sphi 0, %s72
    %s94 = sphi 0, %s96
    %s97 = sphi 0, %s94
    %s98 = sphi 0, %s97
    %s114 = sphi 0, %s98
    %s120 = sphi 0, %s122
    %s123 = sphi 0, %s120
    %s124 = sphi 0, %s123
    %s140 = sphi 0, %s124
    %s146 = sphi 0, %s148
    %s149 = sphi 0, %s146
    %s150 = sphi 0, %s149
    %s166 = sphi 0, %s150
    %s172 = sphi 0, %s174
    %s175 = sphi 0, %s172
    %s176 = sphi 0, %s175
    %s192 = sphi 0, %s176
    %s198 = sphi 0, %s200
    %s201 = sphi 0, %s198
    %s202 = sphi 0, %s201
    %s218 = sphi 0, %s202
    %s224 = sphi 0, %s226
    %s227 = sphi 0, %s224
    %s228 = sphi 0, %s227
    %s244 = sphi 0, %s228
    %s250 = sphi 0, %s252
    %s253 = sphi 0, %s250
    %s254 = sphi 0, %s253
    %s270 = sphi 0, %s254
    %s276 = sphi 0, %s278
    %s279 = sphi 0, %s276
    %s280 = sphi 0, %s279
    %s296 = sphi 0, %s280
    %s302 = sphi 0, %s304
    %s305 = sphi 0, %s302
    %s306 = sphi 0, %s305
    %s322 = sphi 0, %s306
    %s328 = sphi 0, %s330
    %s331 = sphi 0, %s328
    %s332 = sphi 0, %s331
    %s348 = sphi 0, %s332
    %s352 = sphi 0, %s352
    %s354 = sphi 0, %s352
    %s355 = sphi 0, %s354
    %s369 = sphi 0, %s355
    %s373 = sphi 0, %s373
    %s375 = sphi 0, %s373
    %s376 = sphi 0, %s375
    %s390 = sphi 0, %s376
    %s396 = sphi 0, %s398
    %s399 = sphi 0, %s396
    %s400 = sphi 0, %s399
    %s416 = sphi 0, %s400
  $region4: #{gpt_forward.2} parent=0 // loop_header_branch
    %23 = sbr.rel (%p21) target = $region8
  $region5: #{gpt_forward.2} parent=0 // loop_body
    %s25 = ssub.s32 %s20, 1
    %s26 = ssub.s32 %s20, 2
    %s33 = sadd.s32 1, %s28
    %p34 = scmp.ge.s32.totalorder %s33, 2
    %s35 = scalar_select %p34, 0, %s33
    %s36 = sadd.s32 1, %s27
    %s37 = scalar_select %p34, %s36, %s27
    %p38 = scmp.ge.s32.totalorder %s37, 2
    %s39 = scalar_select %p38, 0, %s37
    %s40 = ssub.s32 %s27, %s39
    %p41 = scmp.eq.s32.totalorder %s40, 0
    %s43 = sadd.s32 %s42, 1
    %s44 = scalar_select %p41, %s42, %s43
    %p47 = pneg %p41
    %p48 = scmp.eq.s32.totalorder %s20, 3
    %p49 = por %p47, %p48
    %p50 = scmp.ne.s32.totalorder %s42, %s45
    %p51 = scmp.eq.s32.totalorder %s20, 0
    %p52 = por %p50, %p51
    %p53 = scmp.ne.s32.totalorder %s42, %s45
    %p54 = scmp.eq.s32.totalorder %s25, 3
    %p55 = por %p53, %p54
    %p56 = scmp.ne.s32.totalorder %s45, %s46
    %p57 = scmp.eq.s32.totalorder %s25, 0
    %p58 = por %p56, %p57
    %p59 = scmp.ne.s32.totalorder %s45, %s46
    %p60 = scmp.eq.s32.totalorder %s26, 3
    %p61 = por %p59, %p60
    %p63 = scmp.ne.s32.totalorder %s46, %s62
    %p64 = scmp.eq.s32.totalorder %s26, 0
    %p65 = por %p63, %p64
    %s66 = ssub.s32 %s28, %s35
    %p67 = scmp.eq.s32.totalorder %s66, 0
    %s69 = sadd.s32 %s68, 1
    %s70 = scalar_select %p67, %s68, %s69
    %p73 = pneg %p67
    %p74 = scmp.eq.s32.totalorder %s20, 3
    %p75 = por %p73, %p74
    %p76 = scmp.ne.s32.totalorder %s68, %s71
    %p77 = scmp.eq.s32.totalorder %s20, 0
    %p78 = por %p76, %p77
    %p79 = scmp.ne.s32.totalorder %s68, %s71
    %p80 = scmp.eq.s32.totalorder %s25, 3
    %p81 = por %p79, %p80
    %p82 = scmp.ne.s32.totalorder %s71, %s72
    %p83 = scmp.eq.s32.totalorder %s25, 0
    %p84 = por %p82, %p83
    %p85 = scmp.ne.s32.totalorder %s71, %s72
    %p86 = scmp.eq.s32.totalorder %s26, 3
    %p87 = por %p85, %p86
    %p89 = scmp.ne.s32.totalorder %s72, %s88
    %p90 = scmp.eq.s32.totalorder %s26, 0
    %p91 = por %p89, %p90
    %s92 = ssub.s32 %s28, %s35
    %p93 = scmp.eq.s32.totalorder %s92, 0
    %s95 = sadd.s32 %s94, 1
    %s96 = scalar_select %p93, %s94, %s95
    %p99 = pneg %p93
    %p100 = scmp.eq.s32.totalorder %s20, 3
    %p101 = por %p99, %p100
    %p102 = scmp.ne.s32.totalorder %s94, %s97
    %p103 = scmp.eq.s32.totalorder %s20, 0
    %p104 = por %p102, %p103
    %p105 = scmp.ne.s32.totalorder %s94, %s97
    %p106 = scmp.eq.s32.totalorder %s25, 3
    %p107 = por %p105, %p106
    %p108 = scmp.ne.s32.totalorder %s97, %s98
    %p109 = scmp.eq.s32.totalorder %s25, 0
    %p110 = por %p108, %p109
    %p111 = scmp.ne.s32.totalorder %s97, %s98
    %p112 = scmp.eq.s32.totalorder %s26, 3
    %p113 = por %p111, %p112
    %p115 = scmp.ne.s32.totalorder %s98, %s114
    %p116 = scmp.eq.s32.totalorder %s26, 0
    %p117 = por %p115, %p116
    %s118 = ssub.s32 %s28, %s35
    %p119 = scmp.eq.s32.totalorder %s118, 0
    %s121 = sadd.s32 %s120, 1
    %s122 = scalar_select %p119, %s120, %s121
    %p125 = pneg %p119
    %p126 = scmp.eq.s32.totalorder %s20, 3
    %p127 = por %p125, %p126
    %p128 = scmp.ne.s32.totalorder %s120, %s123
    %p129 = scmp.eq.s32.totalorder %s20, 0
    %p130 = por %p128, %p129
    %p131 = scmp.ne.s32.totalorder %s120, %s123
    %p132 = scmp.eq.s32.totalorder %s25, 3
    %p133 = por %p131, %p132
    %p134 = scmp.ne.s32.totalorder %s123, %s124
    %p135 = scmp.eq.s32.totalorder %s25, 0
    %p136 = por %p134, %p135
    %p137 = scmp.ne.s32.totalorder %s123, %s124
    %p138 = scmp.eq.s32.totalorder %s26, 3
    %p139 = por %p137, %p138
    %p141 = scmp.ne.s32.totalorder %s124, %s140
    %p142 = scmp.eq.s32.totalorder %s26, 0
    %p143 = por %p141, %p142
    %s144 = ssub.s32 %s28, %s35
    %p145 = scmp.eq.s32.totalorder %s144, 0
    %s147 = sadd.s32 %s146, 1
    %s148 = scalar_select %p145, %s146, %s147
    %p151 = pneg %p145
    %p152 = scmp.eq.s32.totalorder %s20, 3
    %p153 = por %p151, %p152
    %p154 = scmp.ne.s32.totalorder %s146, %s149
    %p155 = scmp.eq.s32.totalorder %s20, 0
    %p156 = por %p154, %p155
    %p157 = scmp.ne.s32.totalorder %s146, %s149
    %p158 = scmp.eq.s32.totalorder %s25, 3
    %p159 = por %p157, %p158
    %p160 = scmp.ne.s32.totalorder %s149, %s150
    %p161 = scmp.eq.s32.totalorder %s25, 0
    %p162 = por %p160, %p161
    %p163 = scmp.ne.s32.totalorder %s149, %s150
    %p164 = scmp.eq.s32.totalorder %s26, 3
    %p165 = por %p163, %p164
    %p167 = scmp.ne.s32.totalorder %s150, %s166
    %p168 = scmp.eq.s32.totalorder %s26, 0
    %p169 = por %p167, %p168
    %s170 = ssub.s32 %s28, %s35
    %p171 = scmp.eq.s32.totalorder %s170, 0
    %s173 = sadd.s32 %s172, 1
    %s174 = scalar_select %p171, %s172, %s173
    %p177 = pneg %p171
    %p178 = scmp.eq.s32.totalorder %s20, 3
    %p179 = por %p177, %p178
    %p180 = scmp.ne.s32.totalorder %s172, %s175
    %p181 = scmp.eq.s32.totalorder %s20, 0
    %p182 = por %p180, %p181
    %p183 = scmp.ne.s32.totalorder %s172, %s175
    %p184 = scmp.eq.s32.totalorder %s25, 3
    %p185 = por %p183, %p184
    %p186 = scmp.ne.s32.totalorder %s175, %s176
    %p187 = scmp.eq.s32.totalorder %s25, 0
    %p188 = por %p186, %p187
    %p189 = scmp.ne.s32.totalorder %s175, %s176
    %p190 = scmp.eq.s32.totalorder %s26, 3
    %p191 = por %p189, %p190
    %p193 = scmp.ne.s32.totalorder %s176, %s192
    %p194 = scmp.eq.s32.totalorder %s26, 0
    %p195 = por %p193, %p194
    %s196 = ssub.s32 %s28, %s35
    %p197 = scmp.eq.s32.totalorder %s196, 0
    %s199 = sadd.s32 %s198, 1
    %s200 = scalar_select %p197, %s198, %s199
    %p203 = pneg %p197
    %p204 = scmp.eq.s32.totalorder %s20, 3
    %p205 = por %p203, %p204
    %p206 = scmp.ne.s32.totalorder %s198, %s201
    %p207 = scmp.eq.s32.totalorder %s20, 0
    %p208 = por %p206, %p207
    %p209 = scmp.ne.s32.totalorder %s198, %s201
    %p210 = scmp.eq.s32.totalorder %s25, 3
    %p211 = por %p209, %p210
    %p212 = scmp.ne.s32.totalorder %s201, %s202
    %p213 = scmp.eq.s32.totalorder %s25, 0
    %p214 = por %p212, %p213
    %p215 = scmp.ne.s32.totalorder %s201, %s202
    %p216 = scmp.eq.s32.totalorder %s26, 3
    %p217 = por %p215, %p216
    %p219 = scmp.ne.s32.totalorder %s202, %s218
    %p220 = scmp.eq.s32.totalorder %s26, 0
    %p221 = por %p219, %p220
    %s222 = ssub.s32 %s28, %s35
    %p223 = scmp.eq.s32.totalorder %s222, 0
    %s225 = sadd.s32 %s224, 1
    %s226 = scalar_select %p223, %s224, %s225
    %p229 = pneg %p223
    %p230 = scmp.eq.s32.totalorder %s20, 3
    %p231 = por %p229, %p230
    %p232 = scmp.ne.s32.totalorder %s224, %s227
    %p233 = scmp.eq.s32.totalorder %s20, 0
    %p234 = por %p232, %p233
    %p235 = scmp.ne.s32.totalorder %s224, %s227
    %p236 = scmp.eq.s32.totalorder %s25, 3
    %p237 = por %p235, %p236
    %p238 = scmp.ne.s32.totalorder %s227, %s228
    %p239 = scmp.eq.s32.totalorder %s25, 0
    %p240 = por %p238, %p239
    %p241 = scmp.ne.s32.totalorder %s227, %s228
    %p242 = scmp.eq.s32.totalorder %s26, 3
    %p243 = por %p241, %p242
    %p245 = scmp.ne.s32.totalorder %s228, %s244
    %p246 = scmp.eq.s32.totalorder %s26, 0
    %p247 = por %p245, %p246
    %s248 = ssub.s32 %s28, %s35
    %p249 = scmp.eq.s32.totalorder %s248, 0
    %s251 = sadd.s32 %s250, 1
    %s252 = scalar_select %p249, %s250, %s251
    %p255 = pneg %p249
    %p256 = scmp.eq.s32.totalorder %s20, 3
    %p257 = por %p255, %p256
    %p258 = scmp.ne.s32.totalorder %s250, %s253
    %p259 = scmp.eq.s32.totalorder %s20, 0
    %p260 = por %p258, %p259
    %p261 = scmp.ne.s32.totalorder %s250, %s253
    %p262 = scmp.eq.s32.totalorder %s25, 3
    %p263 = por %p261, %p262
    %p264 = scmp.ne.s32.totalorder %s253, %s254
    %p265 = scmp.eq.s32.totalorder %s25, 0
    %p266 = por %p264, %p265
    %p267 = scmp.ne.s32.totalorder %s253, %s254
    %p268 = scmp.eq.s32.totalorder %s26, 3
    %p269 = por %p267, %p268
    %p271 = scmp.ne.s32.totalorder %s254, %s270
    %p272 = scmp.eq.s32.totalorder %s26, 0
    %p273 = por %p271, %p272
    %s274 = ssub.s32 %s28, %s35
    %p275 = scmp.eq.s32.totalorder %s274, 0
    %s277 = sadd.s32 %s276, 1
    %s278 = scalar_select %p275, %s276, %s277
    %p281 = pneg %p275
    %p282 = scmp.eq.s32.totalorder %s20, 3
    %p283 = por %p281, %p282
    %p284 = scmp.ne.s32.totalorder %s276, %s279
    %p285 = scmp.eq.s32.totalorder %s20, 0
    %p286 = por %p284, %p285
    %p287 = scmp.ne.s32.totalorder %s276, %s279
    %p288 = scmp.eq.s32.totalorder %s25, 3
    %p289 = por %p287, %p288
    %p290 = scmp.ne.s32.totalorder %s279, %s280
    %p291 = scmp.eq.s32.totalorder %s25, 0
    %p292 = por %p290, %p291
    %p293 = scmp.ne.s32.totalorder %s279, %s280
    %p294 = scmp.eq.s32.totalorder %s26, 3
    %p295 = por %p293, %p294
    %p297 = scmp.ne.s32.totalorder %s280, %s296
    %p298 = scmp.eq.s32.totalorder %s26, 0
    %p299 = por %p297, %p298
    %s300 = ssub.s32 %s28, %s35
    %p301 = scmp.eq.s32.totalorder %s300, 0
    %s303 = sadd.s32 %s302, 1
    %s304 = scalar_select %p301, %s302, %s303
    %p307 = pneg %p301
    %p308 = scmp.eq.s32.totalorder %s20, 3
    %p309 = por %p307, %p308
    %p310 = scmp.ne.s32.totalorder %s302, %s305
    %p311 = scmp.eq.s32.totalorder %s20, 0
    %p312 = por %p310, %p311
    %p313 = scmp.ne.s32.totalorder %s302, %s305
    %p314 = scmp.eq.s32.totalorder %s25, 3
    %p315 = por %p313, %p314
    %p316 = scmp.ne.s32.totalorder %s305, %s306
    %p317 = scmp.eq.s32.totalorder %s25, 0
    %p318 = por %p316, %p317
    %p319 = scmp.ne.s32.totalorder %s305, %s306
    %p320 = scmp.eq.s32.totalorder %s26, 3
    %p321 = por %p319, %p320
    %p323 = scmp.ne.s32.totalorder %s306, %s322
    %p324 = scmp.eq.s32.totalorder %s26, 0
    %p325 = por %p323, %p324
    %s326 = ssub.s32 %s28, %s35
    %p327 = scmp.eq.s32.totalorder %s326, 0
    %s329 = sadd.s32 %s328, 1
    %s330 = scalar_select %p327, %s328, %s329
    %p333 = pneg %p327
    %p334 = scmp.eq.s32.totalorder %s20, 3
    %p335 = por %p333, %p334
    %p336 = scmp.ne.s32.totalorder %s328, %s331
    %p337 = scmp.eq.s32.totalorder %s20, 0
    %p338 = por %p336, %p337
    %p339 = scmp.ne.s32.totalorder %s328, %s331
    %p340 = scmp.eq.s32.totalorder %s25, 3
    %p341 = por %p339, %p340
    %p342 = scmp.ne.s32.totalorder %s331, %s332
    %p343 = scmp.eq.s32.totalorder %s25, 0
    %p344 = por %p342, %p343
    %p345 = scmp.ne.s32.totalorder %s331, %s332
    %p346 = scmp.eq.s32.totalorder %s26, 3
    %p347 = por %p345, %p346
    %p349 = scmp.ne.s32.totalorder %s332, %s348
    %p350 = scmp.eq.s32.totalorder %s26, 0
    %p351 = por %p349, %p350
    %s353 = sadd.s32 %s352, 1
    %p356 = scmp.eq.s32.totalorder %s20, 3
    %p357 = scmp.ne.s32.totalorder %s352, %s354
    %p358 = scmp.eq.s32.totalorder %s20, 0
    %p359 = por %p357, %p358
    %p360 = scmp.ne.s32.totalorder %s352, %s354
    %p361 = scmp.eq.s32.totalorder %s25, 3
    %p362 = por %p360, %p361
    %p363 = scmp.ne.s32.totalorder %s354, %s355
    %p364 = scmp.eq.s32.totalorder %s25, 0
    %p365 = por %p363, %p364
    %p366 = scmp.ne.s32.totalorder %s354, %s355
    %p367 = scmp.eq.s32.totalorder %s26, 3
    %p368 = por %p366, %p367
    %p370 = scmp.ne.s32.totalorder %s355, %s369
    %p371 = scmp.eq.s32.totalorder %s26, 0
    %p372 = por %p370, %p371
    %s374 = sadd.s32 %s373, 1
    %p377 = scmp.eq.s32.totalorder %s20, 3
    %p378 = scmp.ne.s32.totalorder %s373, %s375
    %p379 = scmp.eq.s32.totalorder %s20, 0
    %p380 = por %p378, %p379
    %p381 = scmp.ne.s32.totalorder %s373, %s375
    %p382 = scmp.eq.s32.totalorder %s25, 3
    %p383 = por %p381, %p382
    %p384 = scmp.ne.s32.totalorder %s375, %s376
    %p385 = scmp.eq.s32.totalorder %s25, 0
    %p386 = por %p384, %p385
    %p387 = scmp.ne.s32.totalorder %s375, %s376
    %p388 = scmp.eq.s32.totalorder %s26, 3
    %p389 = por %p387, %p388
    %p391 = scmp.ne.s32.totalorder %s376, %s390
    %p392 = scmp.eq.s32.totalorder %s26, 0
    %p393 = por %p391, %p392
    %s394 = ssub.s32 %s27, %s39
    %p395 = scmp.eq.s32.totalorder %s394, 0
    %s397 = sadd.s32 %s396, 1
    %s398 = scalar_select %p395, %s396, %s397
    %p401 = pneg %p395
    %p402 = scmp.eq.s32.totalorder %s20, 3
    %p403 = por %p401, %p402
    %p404 = scmp.ne.s32.totalorder %s396, %s399
    %p405 = scmp.eq.s32.totalorder %s20, 0
    %p406 = por %p404, %p405
    %p407 = scmp.ne.s32.totalorder %s396, %s399
    %p408 = scmp.eq.s32.totalorder %s25, 3
    %p409 = por %p407, %p408
    %p410 = scmp.ne.s32.totalorder %s399, %s400
    %p411 = scmp.eq.s32.totalorder %s25, 0
    %p412 = por %p410, %p411
    %p413 = scmp.ne.s32.totalorder %s399, %s400
    %p414 = scmp.eq.s32.totalorder %s26, 3
    %p415 = por %p413, %p414
    %p417 = scmp.ne.s32.totalorder %s400, %s416
    %p418 = scmp.eq.s32.totalorder %s26, 0
    %p419 = por %p417, %p418
    %p420 = scmp.le.s32.totalorder 1, %s20
    %p421 = scmp.lt.s32.totalorder %s20, 5
    %p422 = pnand %p420, %p421
    %p423 = pneg %p422
    // Predicated region
    $region9: #{gpt_forward.2} parent=5 // pred_check
      _
    $region10: #{gpt_forward.2} parent=5 // pred_check_branch
      %425 = sbr.rel (%p422) target = $region12
    $region11: #{gpt_forward.2} parent=5 // pred_region
      %s426 = ssub.s32 %s20, 1
      // Predicated region
      $region13: #{gpt_forward.2} parent=11 // pred_check
        %p427 = pneg %p365
      $region14: #{gpt_forward.2} parent=11 // pred_check_branch
        %429 = sbr.rel (%p427) target = $region16
      $region15: #{gpt_forward.2} parent=11 // pred_region
        _
      $region16: #{gpt_forward.2} parent=11 // pred_fallthru
        _
      // Predicated region
      $region17: #{gpt_forward.2} parent=11 // pred_check
        %p430 = pneg %p386
      $region18: #{gpt_forward.2} parent=11 // pred_check_branch
        %432 = sbr.rel (%p430) target = $region20
      $region19: #{gpt_forward.2} parent=11 // pred_region
        _
      $region20: #{gpt_forward.2} parent=11 // pred_fallthru
        _
    $region12: #{gpt_forward.2} parent=5 // pred_fallthru
      _
    %p433 = scmp.lt.s32.totalorder %s20, 4
    // Predicated region
    $region21: #{gpt_forward.2} parent=5 // pred_check
      %p434 = pneg %p433
    $region22: #{gpt_forward.2} parent=5 // pred_check_branch
      %436 = sbr.rel (%p434) target = $region24
    $region23: #{gpt_forward.2} parent=5 // pred_region
      // Predicated region
      $region25: #{gpt_forward.2} parent=23 // pred_check
        %p437 = pneg %p52
      $region26: #{gpt_forward.2} parent=23 // pred_check_branch
        %439 = sbr.rel (%p437) target = $region28
      $region27: #{gpt_forward.2} parent=23 // pred_region
        %p440 = scmp.lt.s32.totalorder %s27, 1
        %s441 = scalar_select %p440, %s27, 1
        %s442 = smul.addr %s441, 8
        %s443 = scalar_lea.vmem %s0, %s442
      $region28: #{gpt_forward.2} parent=23 // pred_fallthru
        _
      // Predicated region
      $region29: #{gpt_forward.2} parent=23 // pred_check
        %p444 = pneg %p78
      $region30: #{gpt_forward.2} parent=23 // pred_check_branch
        %446 = sbr.rel (%p444) target = $region32
      $region31: #{gpt_forward.2} parent=23 // pred_region
        %p447 = scmp.lt.s32.totalorder %s28, 1
        %s448 = scalar_select %p447, %s28, 1
        %s449 = scalar_lea.vmem %s1, %s448
      $region32: #{gpt_forward.2} parent=23 // pred_fallthru
        _
      // Predicated region
      $region33: #{gpt_forward.2} parent=23 // pred_check
        %p450 = pneg %p104
      $region34: #{gpt_forward.2} parent=23 // pred_check_branch
        %452 = sbr.rel (%p450) target = $region36
      $region35: #{gpt_forward.2} parent=23 // pred_region
        %p453 = scmp.lt.s32.totalorder %s28, 1
        %s454 = scalar_select %p453, %s28, 1
        %s455 = scalar_lea.vmem %s2, %s454
      $region36: #{gpt_forward.2} parent=23 // pred_fallthru
        _
      // Predicated region
      $region37: #{gpt_forward.2} parent=23 // pred_check
        %p456 = pneg %p130
      $region38: #{gpt_forward.2} parent=23 // pred_check_branch
        %458 = sbr.rel (%p456) target = $region40
      $region39: #{gpt_forward.2} parent=23 // pred_region
        %p459 = scmp.lt.s32.totalorder %s28, 1
        %s460 = scalar_select %p459, %s28, 1
        %s461 = smul.addr %s460, 4
        %s462 = smul.addr %s461, 4
        %s463 = scalar_lea.vmem %s3, %s462
      $region40: #{gpt_forward.2} parent=23 // pred_fallthru
        _
      // Predicated region
      $region41: #{gpt_forward.2} parent=23 // pred_check
        %p464 = pneg %p156
      $region42: #{gpt_forward.2} parent=23 // pred_check_branch
        %466 = sbr.rel (%p464) target = $region44
      $region43: #{gpt_forward.2} parent=23 // pred_region
        %p467 = scmp.lt.s32.totalorder %s28, 1
        %s468 = scalar_select %p467, %s28, 1
        %s469 = smul.addr %s468, 4
        %s470 = smul.addr %s469, 4
        %s471 = scalar_lea.vmem %s4, %s470
      $region44: #{gpt_forward.2} parent=23 // pred_fallthru
        _
      // Predicated region
      $region45: #{gpt_forward.2} parent=23 // pred_check
        %p472 = pneg %p182
      $region46: #{gpt_forward.2} parent=23 // pred_check_branch
        %474 = sbr.rel (%p472) target = $region48
      $region47: #{gpt_forward.2} parent=23 // pred_region
        %p475 = scmp.lt.s32.totalorder %s28, 1
        %s476 = scalar_select %p475, %s28, 1
        %s477 = scalar_lea.vmem %s5, %s476
      $region48: #{gpt_forward.2} parent=23 // pred_fallthru
        _
      // Predicated region
      $region49: #{gpt_forward.2} parent=23 // pred_check
        %p478 = pneg %p208
      $region50: #{gpt_forward.2} parent=23 // pred_check_branch
        %480 = sbr.rel (%p478) target = $region52
      $region51: #{gpt_forward.2} parent=23 // pred_region
        %p481 = scmp.lt.s32.totalorder %s28, 1
        %s482 = scalar_select %p481, %s28, 1
        %s483 = scalar_lea.vmem %s6, %s482
      $region52: #{gpt_forward.2} parent=23 // pred_fallthru
        _
      // Predicated region
      $region53: #{gpt_forward.2} parent=23 // pred_check
        %p484 = pneg %p234
      $region54: #{gpt_forward.2} parent=23 // pred_check_branch
        %486 = sbr.rel (%p484) target = $region56
      $region55: #{gpt_forward.2} parent=23 // pred_region
        %p487 = scmp.lt.s32.totalorder %s28, 1
        %s488 = scalar_select %p487, %s28, 1
        %s489 = scalar_lea.vmem %s7, %s488
      $region56: #{gpt_forward.2} parent=23 // pred_fallthru
        _
      // Predicated region
      $region57: #{gpt_forward.2} parent=23 // pred_check
        %p490 = pneg %p260
      $region58: #{gpt_forward.2} parent=23 // pred_check_branch
        %492 = sbr.rel (%p490) target = $region60
      $region59: #{gpt_forward.2} parent=23 // pred_region
        %p493 = scmp.lt.s32.totalorder %s28, 1
        %s494 = scalar_select %p493, %s28, 1
        %s495 = smul.addr %s494, 4
        %s496 = smul.addr %s495, 4
        %s497 = scalar_lea.vmem %s8, %s496
      $region60: #{gpt_forward.2} parent=23 // pred_fallthru
        _
      // Predicated region
      $region61: #{gpt_forward.2} parent=23 // pred_check
        %p498 = pneg %p286
      $region62: #{gpt_forward.2} parent=23 // pred_check_branch
        %500 = sbr.rel (%p498) target = $region64
      $region63: #{gpt_forward.2} parent=23 // pred_region
        %p501 = scmp.lt.s32.totalorder %s28, 1
        %s502 = scalar_select %p501, %s28, 1
        %s503 = scalar_lea.vmem %s9, %s502
      $region64: #{gpt_forward.2} parent=23 // pred_fallthru
        _
      // Predicated region
      $region65: #{gpt_forward.2} parent=23 // pred_check
        %p504 = pneg %p312
      $region66: #{gpt_forward.2} parent=23 // pred_check_branch
        %506 = sbr.rel (%p504) target = $region68
      $region67: #{gpt_forward.2} parent=23 // pred_region
        %p507 = scmp.lt.s32.totalorder %s28, 1
        %s508 = scalar_select %p507, %s28, 1
        %s509 = smul.addr %s508, 16
        %s510 = smul.addr %s509, 4
        %s511 = scalar_lea.vmem %s10, %s510
      $region68: #{gpt_forward.2} parent=23 // pred_fallthru
        _
      // Predicated region
      $region69: #{gpt_forward.2} parent=23 // pred_check
        %p512 = pneg %p338
      $region70: #{gpt_forward.2} parent=23 // pred_check_branch
        %514 = sbr.rel (%p512) target = $region72
      $region71: #{gpt_forward.2} parent=23 // pred_region
        %p515 = scmp.lt.s32.totalorder %s28, 1
        %s516 = scalar_select %p515, %s28, 1
        %s517 = scalar_lea.vmem %s11, %s516
      $region72: #{gpt_forward.2} parent=23 // pred_fallthru
        _
    $region24: #{gpt_forward.2} parent=5 // pred_fallthru
      _
    %p518 = scmp.le.s32.totalorder 1, %s20
    %p519 = scmp.lt.s32.totalorder %s20, 5
    %p520 = pnand %p518, %p519
    %p521 = pneg %p520
    // Predicated region
    $region73: #{gpt_forward.2} parent=5 // pred_check
      _
    $region74: #{gpt_forward.2} parent=5 // pred_check_branch
      %523 = sbr.rel (%p520) target = $region76
    $region75: #{gpt_forward.2} parent=5 // pred_region
      %s524 = ssub.s32 %s20, 1
      %p525 = scmp.lt.s32.totalorder %s29, 1
      %s526 = scalar_select %p525, %s29, 1
      %s527 = smul.addr %s526, 8
      %s528 = scalar_lea.vmem %s0, %s527
      %p529 = pneg %p58
      %p530 = pneg %p55
      %p531 = scmp.lt.s32.totalorder %s30, 1
      %s532 = scalar_select %p531, %s30, 1
      %s533 = scalar_lea.vmem %s1, %s532
      %p534 = pneg %p84
      %p535 = pneg %p81
      %p536 = scmp.lt.s32.totalorder %s30, 1
      %s537 = scalar_select %p536, %s30, 1
      %s538 = scalar_lea.vmem %s2, %s537
      %p539 = pneg %p110
      %p540 = pneg %p107
      %p541 = scmp.lt.s32.totalorder %s30, 1
      %s542 = scalar_select %p541, %s30, 1
      %s543 = smul.addr %s542, 4
      %s544 = smul.addr %s543, 4
      %s545 = scalar_lea.vmem %s3, %s544
      %p546 = pneg %p136
      %p547 = pneg %p133
      %p548 = scmp.lt.s32.totalorder %s30, 1
      %s549 = scalar_select %p548, %s30, 1
      %s550 = smul.addr %s549, 4
      %s551 = smul.addr %s550, 4
      %s552 = scalar_lea.vmem %s4, %s551
      %p553 = pneg %p162
      %p554 = pneg %p159
      %p555 = scmp.lt.s32.totalorder %s30, 1
      %s556 = scalar_select %p555, %s30, 1
      %s557 = scalar_lea.vmem %s5, %s556
      %p558 = pneg %p188
      %p559 = pneg %p185
      %p560 = scmp.lt.s32.totalorder %s30, 1
      %s561 = scalar_select %p560, %s30, 1
      %s562 = scalar_lea.vmem %s6, %s561
      %p563 = pneg %p214
      %p564 = pneg %p211
      %p565 = scmp.lt.s32.totalorder %s30, 1
      %s566 = scalar_select %p565, %s30, 1
      %s567 = scalar_lea.vmem %s7, %s566
      %p568 = pneg %p240
      %p569 = pneg %p237
      %p570 = scmp.lt.s32.totalorder %s30, 1
      %s571 = scalar_select %p570, %s30, 1
      %s572 = smul.addr %s571, 4
      %s573 = smul.addr %s572, 4
      %s574 = scalar_lea.vmem %s8, %s573
      %p575 = pneg %p266
      %p576 = pneg %p263
      %p577 = scmp.lt.s32.totalorder %s30, 1
      %s578 = scalar_select %p577, %s30, 1
      %s579 = scalar_lea.vmem %s9, %s578
      %p580 = pneg %p292
      %p581 = pneg %p289
      %p582 = scmp.lt.s32.totalorder %s30, 1
      %s583 = scalar_select %p582, %s30, 1
      %s584 = smul.addr %s583, 16
      %s585 = smul.addr %s584, 4
      %s586 = scalar_lea.vmem %s10, %s585
      %p587 = pneg %p318
      %p588 = pneg %p315
      %p589 = scmp.lt.s32.totalorder %s30, 1
      %s590 = scalar_select %p589, %s30, 1
      %s591 = scalar_lea.vmem %s11, %s590
      %p592 = pneg %p344
      %p593 = pneg %p341
      %p594 = pneg %p365
      %p595 = pneg %p362
      %p596 = pneg %p386
      %p597 = pneg %p383
      %p598 = pneg %p412
      %p599 = pneg %p409
      %p600 = scmp.lt.s32.totalorder %s29, 1
      %s601 = scalar_select %p600, %s29, 1
      %s602 = smul.addr %s601, 8
      %s603 = scalar_lea.vmem %s14, %s602
      %p604 = scmp.lt.s32.totalorder %s29, 1
      %s605 = scalar_select %p604, %s29, 1
      %s606 = smul.addr %s605, 8
      %s607 = scalar_lea.vmem %s0, %s606
      %p608 = scmp.lt.s32.totalorder %s30, 1
      %s609 = scalar_select %p608, %s30, 1
      %s610 = scalar_lea.vmem %s1, %s609
      %p611 = scmp.lt.s32.totalorder %s30, 1
      %s612 = scalar_select %p611, %s30, 1
      %s613 = scalar_lea.vmem %s2, %s612
      %p614 = scmp.lt.s32.totalorder %s30, 1
      %s615 = scalar_select %p614, %s30, 1
      %s616 = smul.addr %s615, 4
      %s617 = smul.addr %s616, 4
      %s618 = scalar_lea.vmem %s3, %s617
      %p619 = scmp.lt.s32.totalorder %s30, 1
      %s620 = scalar_select %p619, %s30, 1
      %s621 = smul.addr %s620, 4
      %s622 = smul.addr %s621, 4
      %s623 = scalar_lea.vmem %s4, %s622
      %p624 = scmp.lt.s32.totalorder %s30, 1
      %s625 = scalar_select %p624, %s30, 1
      %s626 = scalar_lea.vmem %s5, %s625
      %p627 = scmp.lt.s32.totalorder %s30, 1
      %s628 = scalar_select %p627, %s30, 1
      %s629 = scalar_lea.vmem %s6, %s628
      %p630 = scmp.lt.s32.totalorder %s30, 1
      %s631 = scalar_select %p630, %s30, 1
      %s632 = scalar_lea.vmem %s7, %s631
      %p633 = scmp.lt.s32.totalorder %s30, 1
      %s634 = scalar_select %p633, %s30, 1
      %s635 = smul.addr %s634, 4
      %s636 = smul.addr %s635, 4
      %s637 = scalar_lea.vmem %s8, %s636
      %p638 = scmp.lt.s32.totalorder %s30, 1
      %s639 = scalar_select %p638, %s30, 1
      %s640 = scalar_lea.vmem %s9, %s639
      %p641 = scmp.lt.s32.totalorder %s30, 1
      %s642 = scalar_select %p641, %s30, 1
      %s643 = smul.addr %s642, 16
      %s644 = smul.addr %s643, 4
      %s645 = scalar_lea.vmem %s10, %s644
      %p646 = scmp.lt.s32.totalorder %s30, 1
      %s647 = scalar_select %p646, %s30, 1
      %s648 = scalar_lea.vmem %s11, %s647
      %p649 = scmp.lt.s32.totalorder %s29, 1
      %s650 = scalar_select %p649, %s29, 1
      %s651 = smul.addr %s650, 8
      %s652 = scalar_lea.vmem %s14, %s651
      %p654 = scmp.eq.s32.totalorder %s30, 0
      // Predicated region
      $region77: #{gpt_forward.2} parent=75 // pred_check
        %p655 = pneg %p654
      $region78: #{gpt_forward.2} parent=75 // pred_check_branch
        %657 = sbr.rel (%p655) target = $region80
      $region79: #{gpt_forward.2} parent=75 // pred_region
        %v658 = vld [vmem:[%s607] sm:$0xff]
        %vm659 = vcmask 261120
        %660 = vst.msk [vmem:[%s652] sm:$0xff] %vm659, %v658
      $region80: #{gpt_forward.2} parent=75 // pred_fallthru
        _
      %v661 = vld [vmem:[%s652] sm:$0xff]
      %v662 = vld [vmem:[%s610] sm:$0x1]
      %v663 = vld [vmem:[%s613] sm:$0x1]
      %vm664 = vcmask 261120
      %v665 = vsel %vm664, %v661, 0.0
      %666 = vadd.xlane.f32.xlu0 %v665
      %v667 = vpop.xlane.xlu0 %666
      %v668 = vrcp.pop 32.0
      %v669 = vmul.f32 %v667, %v668
      %v670 = vsub.f32 %v661, %v669
      %v671 = vmul.f32 %v670, %v670
      %v672 = vsel %vm664, %v671, 0.0
      %673 = vadd.xlane.f32.xlu0 %v672
      %v674 = vpop.xlane.xlu0 %673
      %v675 = vmul.f32 %v674, %v668
      %v677 = vlaneseq
      %v678 = vshrl.u32 %v677, 7
      %v679 = vsub.s32 0, %v678
      %v680 = vrot.slane %v662, %v679
      %v682 = vmul.f32 %v680, %v670
      %v683 = vadd.f32 %v675, 1e-05
      %v684 = vrsqrt.pop %v683
      %v685 = vmul.f32 %v682, %v684
      %v687 = vlaneseq
      %v688 = vshrl.u32 %v687, 7
      %v689 = vsub.s32 0, %v688
      %v690 = vrot.slane %v663, %v689
      %v692 = vadd.f32 %v685, %v690
      %v693 = vpack.c.bf16 %v692, %v692
      %v694 = vld [vmem:[%s618] sm:$0xf]
      %v695 = vld [vmem:[%s618 + $0x4] sm:$0xf]
      %v696 = vld [vmem:[%s618 + $0x8] sm:$0xf]
      %v697 = vld [vmem:[%s618 + $0xc] sm:$0xf]
      %v702 = vunpack.c.l.b16 %v694
      %v703 = vunpack.c.l.b16 %v695
      %v704 = vunpack.c.l.b16 %v696
      %v705 = vunpack.c.l.b16 %v697
      %v706 = vpack.c.b16 %v703, %v702
      %v707 = vpack.c.b16 %v705, %v704
      %v711 = vsel %vm664, %v693, 0
      %713 = vmatprep.subr.bf16.mxu0 0
      %714 = vmatpush1.bf16.msra.mxu0 0
      %715 = vmatprep.subr.bf16.mxu0 0
      %716 = vmatpush1.bf16.msra.mxu0 0
      %717 = vmatprep.subr.bf16.mxu0 0
      %718 = vmatpush1.bf16.msra.mxu0 0
      %719 = vmatprep.subr.bf16.mxu0 0
      %720 = vmatpush1.bf16.msra.mxu0 0
      %721 = vmatprep.subr.bf16.mxu0 0
      %722 = vmatpush1.bf16.msra.mxu0 0
      %723 = vmatprep.subr.bf16.mxu0 0
      %724 = vmatpush1.bf16.msra.mxu0 0
      %725 = vmatprep.subr.bf16.mxu0 0
      %726 = vmatpush1.bf16.msra.mxu0 %v707
      %727 = vmatprep.subr.bf16.mxu0 0
      %728 = vmatpush1.bf16.msra.mxu0 %v706
      %729 = vmatprep.subr.bf16.mxu0 0
      %730 = vmatpush2.bf16.msra.mxu0 0
      %731 = vmatprep.subr.bf16.mxu0 0
      %732 = vmatpush2.bf16.msra.mxu0 0
      %733 = vmatprep.subr.bf16.mxu0 0
      %734 = vmatpush2.bf16.msra.mxu0 0
      %735 = vmatprep.subr.bf16.mxu0 0
      %736 = vmatpush2.bf16.msra.mxu0 0
      %737 = vmatprep.subr.bf16.mxu0 0
      %738 = vmatpush2.bf16.msra.mxu0 0
      %739 = vmatprep.subr.bf16.mxu0 0
      %740 = vmatpush2.bf16.msra.mxu0 0
      %741 = vmatprep.subr.bf16.mxu0 0
      %742 = vmatpush2.bf16.msra.mxu0 0
      %743 = vmatprep.subr.bf16.mxu0 0
      %744 = vmatpush2.bf16.msra.mxu0 0
      %745 = vmatprep.mubr.bf16.mxu0 0
      %746 = vmatmul.mubr.bf16.gmra.mxu0 %v711
      %v747 = vpop.f32.mrf.mxu0
      %v748 = vadd.f32 0.0, %v747
      %v749 = vpop.f32.mrf.mxu0
      %v750 = vpop.f32.mrf.mxu0
      %v751 = vpop.f32.mrf.mxu0
      %752 = vdwg.mxu0
      %v753 = vpack.c.bf16 %v748, %v748
      %755 = vrot.lane.b32.xlu0 %v753, 120
      %v756 = vpop.permute.xlu0 %755
      %757 = vrot.lane.b32.xlu0 %v753, 112
      %v758 = vpop.permute.xlu0 %757
      %759 = vrot.lane.b32.xlu0 %v753, 104
      %v760 = vpop.permute.xlu0 %759
      %761 = vrot.lane.b32.xlu0 %v753, 96
      %v762 = vpop.permute.xlu0 %761
      %763 = vrot.lane.b32.xlu0 %v756, 96
      %v764 = vpop.permute.xlu0 %763
      %765 = vrot.lane.b32.xlu0 %v758, 96
      %v766 = vpop.permute.xlu0 %765
      %767 = vrot.lane.b32.xlu0 %v760, 96
      %v768 = vpop.permute.xlu0 %767
      %773 = vxpose.xlu0.c.b16.start [1/8] %v762, 128
      %774 = vxpose.xlu0.c.b16.cont [2/8] 0, 128
      %775 = vxpose.xlu0.c.b16.cont [3/8] 0, 128
      %776 = vxpose.xlu0.c.b16.cont [4/8] 0, 128
      %777 = vxpose.xlu0.c.b16.cont [5/8] 0, 128
      %778 = vxpose.xlu0.c.b16.cont [6/8] 0, 128
      %779 = vxpose.xlu0.c.b16.cont [7/8] 0, 128
      %780 = vxpose.xlu0.c.b16.end [8/8] 0, 128
      %v781 = vpop.trf.xlu0
      %v782 = vpop.trf.xlu0
      %v783 = vpop.trf.xlu0
      %v784 = vpop.trf.xlu0
      %v785 = vpop.trf.xlu0
      %v786 = vpop.trf.xlu0
      %v787 = vpop.trf.xlu0
      %v788 = vpop.trf.xlu0
      %789 = vxpose.xlu0.c.b16.start [1/8] %v764, 128
      %790 = vxpose.xlu0.c.b16.cont [2/8] 0, 128
      %791 = vxpose.xlu0.c.b16.cont [3/8] 0, 128
      %792 = vxpose.xlu0.c.b16.cont [4/8] 0, 128
      %793 = vxpose.xlu0.c.b16.cont [5/8] 0, 128
      %794 = vxpose.xlu0.c.b16.cont [6/8] 0, 128
      %795 = vxpose.xlu0.c.b16.cont [7/8] 0, 128
      %796 = vxpose.xlu0.c.b16.end [8/8] 0, 128
      %v797 = vpop.trf.xlu0
      %v798 = vpop.trf.xlu0
      %v799 = vpop.trf.xlu0
      %v800 = vpop.trf.xlu0
      %v801 = vpop.trf.xlu0
      %v802 = vpop.trf.xlu0
      %v803 = vpop.trf.xlu0
      %v804 = vpop.trf.xlu0
      %805 = vxpose.xlu0.c.b16.start [1/8] %v766, 128
      %806 = vxpose.xlu0.c.b16.cont [2/8] 0, 128
      %807 = vxpose.xlu0.c.b16.cont [3/8] 0, 128
      %808 = vxpose.xlu0.c.b16.cont [4/8] 0, 128
      %809 = vxpose.xlu0.c.b16.cont [5/8] 0, 128
      %810 = vxpose.xlu0.c.b16.cont [6/8] 0, 128
      %811 = vxpose.xlu0.c.b16.cont [7/8] 0, 128
      %812 = vxpose.xlu0.c.b16.end [8/8] 0, 128
      %v813 = vpop.trf.xlu0
      %v814 = vpop.trf.xlu0
      %v815 = vpop.trf.xlu0
      %v816 = vpop.trf.xlu0
      %v817 = vpop.trf.xlu0
      %v818 = vpop.trf.xlu0
      %v819 = vpop.trf.xlu0
      %v820 = vpop.trf.xlu0
      %821 = vxpose.xlu0.c.b16.start [1/8] %v768, 128
      %822 = vxpose.xlu0.c.b16.cont [2/8] 0, 128
      %823 = vxpose.xlu0.c.b16.cont [3/8] 0, 128
      %824 = vxpose.xlu0.c.b16.cont [4/8] 0, 128
      %825 = vxpose.xlu0.c.b16.cont [5/8] 0, 128
      %826 = vxpose.xlu0.c.b16.cont [6/8] 0, 128
      %827 = vxpose.xlu0.c.b16.cont [7/8] 0, 128
      %828 = vxpose.xlu0.c.b16.end [8/8] 0, 128
      %v829 = vpop.trf.xlu0
      %v830 = vpop.trf.xlu0
      %v831 = vpop.trf.xlu0
      %v832 = vpop.trf.xlu0
      %v833 = vpop.trf.xlu0
      %v834 = vpop.trf.xlu0
      %v835 = vpop.trf.xlu0
      %v836 = vpop.trf.xlu0
      %vm837 = vcmask 64512
      %v839 = vsel %vm837, %v753, 0
      %vm841 = vcmask 1043456
      %v843 = vsel %vm841, %v781, 0
      %845 = vmatprep.subr.bf16.mxu0 0
      %846 = vmatpush1.bf16.msra.mxu0 0
      %847 = vmatprep.subr.bf16.mxu0 0
      %848 = vmatpush1.bf16.msra.mxu0 0
      %849 = vmatprep.subr.bf16.mxu0 0
      %850 = vmatpush1.bf16.msra.mxu0 0
      %851 = vmatprep.subr.bf16.mxu0 0
      %852 = vmatpush1.bf16.msra.mxu0 0
      %853 = vmatprep.subr.bf16.mxu0 0
      %854 = vmatpush1.bf16.msra.mxu0 0
      %855 = vmatprep.subr.bf16.mxu0 0
      %856 = vmatpush1.bf16.msra.mxu0 0
      %857 = vmatprep.subr.bf16.mxu0 0
      %858 = vmatpush1.bf16.msra.mxu0 0
      %859 = vmatprep.subr.bf16.mxu0 0
      %860 = vmatpush1.bf16.msra.mxu0 %v843
      %861 = vmatprep.subr.bf16.mxu0 0
      %862 = vmatpush2.bf16.msra.mxu0 0
      %863 = vmatprep.subr.bf16.mxu0 0
      %864 = vmatpush2.bf16.msra.mxu0 0
      %865 = vmatprep.subr.bf16.mxu0 0
      %866 = vmatpush2.bf16.msra.mxu0 0
      %867 = vmatprep.subr.bf16.mxu0 0
      %868 = vmatpush2.bf16.msra.mxu0 0
      %869 = vmatprep.subr.bf16.mxu0 0
      %870 = vmatpush2.bf16.msra.mxu0 0
      %871 = vmatprep.subr.bf16.mxu0 0
      %872 = vmatpush2.bf16.msra.mxu0 0
      %873 = vmatprep.subr.bf16.mxu0 0
      %874 = vmatpush2.bf16.msra.mxu0 0
      %875 = vmatprep.subr.bf16.mxu0 0
      %876 = vmatpush2.bf16.msra.mxu0 0
      %877 = vmatprep.mubr.bf16.mxu0 0
      %878 = vmatmul.mubr.bf16.gmra.mxu0 %v839
      %v879 = vpop.f32.mrf.mxu0
      %v880 = vadd.f32 0.0, %v879
      %v881 = vpop.f32.mrf.mxu0
      %v882 = vpop.f32.mrf.mxu0
      %v883 = vpop.f32.mrf.mxu0
      %884 = vdwg.mxu0
      %v886 = vsel %vm837, %v756, 0
      %v889 = vsel %vm841, %v797, 0
      %891 = vmatprep.subr.bf16.mxu0 0
      %892 = vmatpush1.bf16.msra.mxu0 0
      %893 = vmatprep.subr.bf16.mxu0 0
      %894 = vmatpush1.bf16.msra.mxu0 0
      %895 = vmatprep.subr.bf16.mxu0 0
      %896 = vmatpush1.bf16.msra.mxu0 0
      %897 = vmatprep.subr.bf16.mxu0 0
      %898 = vmatpush1.bf16.msra.mxu0 0
      %899 = vmatprep.subr.bf16.mxu0 0
      %900 = vmatpush1.bf16.msra.mxu0 0
      %901 = vmatprep.subr.bf16.mxu0 0
      %902 = vmatpush1.bf16.msra.mxu0 0
      %903 = vmatprep.subr.bf16.mxu0 0
      %904 = vmatpush1.bf16.msra.mxu0 0
      %905 = vmatprep.subr.bf16.mxu0 0
      %906 = vmatpush1.bf16.msra.mxu0 %v889
      %907 = vmatprep.subr.bf16.mxu0 0
      %908 = vmatpush2.bf16.msra.mxu0 0
      %909 = vmatprep.subr.bf16.mxu0 0
      %910 = vmatpush2.bf16.msra.mxu0 0
      %911 = vmatprep.subr.bf16.mxu0 0
      %912 = vmatpush2.bf16.msra.mxu0 0
      %913 = vmatprep.subr.bf16.mxu0 0
      %914 = vmatpush2.bf16.msra.mxu0 0
      %915 = vmatprep.subr.bf16.mxu0 0
      %916 = vmatpush2.bf16.msra.mxu0 0
      %917 = vmatprep.subr.bf16.mxu0 0
      %918 = vmatpush2.bf16.msra.mxu0 0
      %919 = vmatprep.subr.bf16.mxu0 0
      %920 = vmatpush2.bf16.msra.mxu0 0
      %921 = vmatprep.subr.bf16.mxu0 0
      %922 = vmatpush2.bf16.msra.mxu0 0
      %923 = vmatprep.mubr.bf16.mxu0 0
      %924 = vmatmul.mubr.bf16.gmra.mxu0 %v886
      %v925 = vpop.f32.mrf.mxu0
      %v926 = vadd.f32 0.0, %v925
      %v927 = vpop.f32.mrf.mxu0
      %v928 = vpop.f32.mrf.mxu0
      %v929 = vpop.f32.mrf.mxu0
      %930 = vdwg.mxu0
      %v932 = vsel %vm837, %v758, 0
      %v935 = vsel %vm841, %v813, 0
      %937 = vmatprep.subr.bf16.mxu0 0
      %938 = vmatpush1.bf16.msra.mxu0 0
      %939 = vmatprep.subr.bf16.mxu0 0
      %940 = vmatpush1.bf16.msra.mxu0 0
      %941 = vmatprep.subr.bf16.mxu0 0
      %942 = vmatpush1.bf16.msra.mxu0 0
      %943 = vmatprep.subr.bf16.mxu0 0
      %944 = vmatpush1.bf16.msra.mxu0 0
      %945 = vmatprep.subr.bf16.mxu0 0
      %946 = vmatpush1.bf16.msra.mxu0 0
      %947 = vmatprep.subr.bf16.mxu0 0
      %948 = vmatpush1.bf16.msra.mxu0 0
      %949 = vmatprep.subr.bf16.mxu0 0
      %950 = vmatpush1.bf16.msra.mxu0 0
      %951 = vmatprep.subr.bf16.mxu0 0
      %952 = vmatpush1.bf16.msra.mxu0 %v935
      %953 = vmatprep.subr.bf16.mxu0 0
      %954 = vmatpush2.bf16.msra.mxu0 0
      %955 = vmatprep.subr.bf16.mxu0 0
      %956 = vmatpush2.bf16.msra.mxu0 0
      %957 = vmatprep.subr.bf16.mxu0 0
      %958 = vmatpush2.bf16.msra.mxu0 0
      %959 = vmatprep.subr.bf16.mxu0 0
      %960 = vmatpush2.bf16.msra.mxu0 0
      %961 = vmatprep.subr.bf16.mxu0 0
      %962 = vmatpush2.bf16.msra.mxu0 0
      %963 = vmatprep.subr.bf16.mxu0 0
      %964 = vmatpush2.bf16.msra.mxu0 0
      %965 = vmatprep.subr.bf16.mxu0 0
      %966 = vmatpush2.bf16.msra.mxu0 0
      %967 = vmatprep.subr.bf16.mxu0 0
      %968 = vmatpush2.bf16.msra.mxu0 0
      %969 = vmatprep.mubr.bf16.mxu0 0
      %970 = vmatmul.mubr.bf16.gmra.mxu0 %v932
      %v971 = vpop.f32.mrf.mxu0
      %v972 = vadd.f32 0.0, %v971
      %v973 = vpop.f32.mrf.mxu0
      %v974 = vpop.f32.mrf.mxu0
      %v975 = vpop.f32.mrf.mxu0
      %976 = vdwg.mxu0
      %v978 = vsel %vm837, %v760, 0
      %v981 = vsel %vm841, %v829, 0
      %983 = vmatprep.subr.bf16.mxu0 0
      %984 = vmatpush1.bf16.msra.mxu0 0
      %985 = vmatprep.subr.bf16.mxu0 0
      %986 = vmatpush1.bf16.msra.mxu0 0
      %987 = vmatprep.subr.bf16.mxu0 0
      %988 = vmatpush1.bf16.msra.mxu0 0
      %989 = vmatprep.subr.bf16.mxu0 0
      %990 = vmatpush1.bf16.msra.mxu0 0
      %991 = vmatprep.subr.bf16.mxu0 0
      %992 = vmatpush1.bf16.msra.mxu0 0
      %993 = vmatprep.subr.bf16.mxu0 0
      %994 = vmatpush1.bf16.msra.mxu0 0
      %995 = vmatprep.subr.bf16.mxu0 0
      %996 = vmatpush1.bf16.msra.mxu0 0
      %997 = vmatprep.subr.bf16.mxu0 0
      %998 = vmatpush1.bf16.msra.mxu0 %v981
      %999 = vmatprep.subr.bf16.mxu0 0
      %1000 = vmatpush2.bf16.msra.mxu0 0
      %1001 = vmatprep.subr.bf16.mxu0 0
      %1002 = vmatpush2.bf16.msra.mxu0 0
      %1003 = vmatprep.subr.bf16.mxu0 0
      %1004 = vmatpush2.bf16.msra.mxu0 0
      %1005 = vmatprep.subr.bf16.mxu0 0
      %1006 = vmatpush2.bf16.msra.mxu0 0
      %1007 = vmatprep.subr.bf16.mxu0 0
      %1008 = vmatpush2.bf16.msra.mxu0 0
      %1009 = vmatprep.subr.bf16.mxu0 0
      %1010 = vmatpush2.bf16.msra.mxu0 0
      %1011 = vmatprep.subr.bf16.mxu0 0
      %1012 = vmatpush2.bf16.msra.mxu0 0
      %1013 = vmatprep.subr.bf16.mxu0 0
      %1014 = vmatpush2.bf16.msra.mxu0 0
      %1015 = vmatprep.mubr.bf16.mxu0 0
      %1016 = vmatmul.mubr.bf16.gmra.mxu0 %v978
      %v1017 = vpop.f32.mrf.mxu0
      %v1018 = vadd.f32 0.0, %v1017
      %v1019 = vpop.f32.mrf.mxu0
      %v1020 = vpop.f32.mrf.mxu0
      %v1021 = vpop.f32.mrf.mxu0
      %1022 = vdwg.mxu0
      %v1023 = vlaneseq
      %v1024 = vshrl.u32 %v1023, 7
      %v1025 = vlaneseq
      %v1026 = vand.u32 %v1025, 127
      %vm1027 = vcmp.gt.s32.totalorder %v1026, %v1024
      %v1028 = vsel %vm1027, 1, 0
      %vm1029 = vcmp.eq.s32.totalorder %v1028, 1
      %v1030 = vsel %vm1029, -inf, %v880
      %v1031 = vsel %vm1029, -inf, %v926
      %v1032 = vsel %vm1029, -inf, %v972
      %v1033 = vsel %vm1029, -inf, %v1018
      %v1034 = vsel %vm837, %v1030, -inf
      %1035 = vmax.xlane.f32.xlu0 %v1034
      %v1036 = vpop.xlane.xlu0 %1035
      %v1037 = vsel %vm837, %v1031, -inf
      %1038 = vmax.xlane.f32.xlu0 %v1037
      %v1039 = vpop.xlane.xlu0 %1038
      %v1040 = vsel %vm837, %v1032, -inf
      %1041 = vmax.xlane.f32.xlu0 %v1040
      %v1042 = vpop.xlane.xlu0 %1041
      %v1043 = vsel %vm837, %v1033, -inf
      %1044 = vmax.xlane.f32.xlu0 %v1043
      %v1045 = vpop.xlane.xlu0 %1044
      %v1046 = vsub.f32 %v1030, %v1036
      %v1047 = vsub.f32 %v1031, %v1039
      %v1048 = vsub.f32 %v1032, %v1042
      %v1049 = vsub.f32 %v1033, %v1045
      %v1050 = vmul.f32 %v1046, 1.442695
      %v1051 = vpow.pop %v1050
      %v1052 = vmul.f32 %v1047, 1.442695
      %v1053 = vpow.pop %v1052
      %v1054 = vmul.f32 %v1048, 1.442695
      %v1055 = vpow.pop %v1054
      %v1056 = vmul.f32 %v1049, 1.442695
      %v1057 = vpow.pop %v1056
      %v1058 = vsel %vm837, %v1051, 0.0
      %1059 = vadd.xlane.f32.xlu0 %v1058
      %v1060 = vpop.xlane.xlu0 %1059
      %v1061 = vsel %vm837, %v1053, 0.0
      %1062 = vadd.xlane.f32.xlu0 %v1061
      %v1063 = vpop.xlane.xlu0 %1062
      %v1064 = vsel %vm837, %v1055, 0.0
      %1065 = vadd.xlane.f32.xlu0 %v1064
      %v1066 = vpop.xlane.xlu0 %1065
      %v1067 = vsel %vm837, %v1057, 0.0
      %1068 = vadd.xlane.f32.xlu0 %v1067
      %v1069 = vpop.xlane.xlu0 %1068
      %v1070 = vrcp.pop %v1060
      %v1071 = vrcp.pop %v1063
      %v1072 = vrcp.pop %v1066
      %v1073 = vrcp.pop %v1069
      %v1074 = vmul.f32 %v1051, %v1070
      %v1075 = vmul.f32 %v1053, %v1071
      %v1076 = vmul.f32 %v1055, %v1072
      %v1077 = vmul.f32 %v1057, %v1073
      %v1078 = vpack.c.bf16 %v1074, %v1074
      %v1079 = vpack.c.bf16 %v1075, %v1075
      %v1080 = vpack.c.bf16 %v1076, %v1076
      %v1081 = vpack.c.bf16 %v1077, %v1077
      %1082 = vrot.lane.b32.xlu0 %v753, 64
      %v1083 = vpop.permute.xlu0 %1082
      %1084 = vrot.lane.b32.xlu0 %v756, 64
      %v1085 = vpop.permute.xlu0 %1084
      %1086 = vrot.lane.b32.xlu0 %v758, 64
      %v1087 = vpop.permute.xlu0 %1086
      %1088 = vrot.lane.b32.xlu0 %v760, 64
      %v1089 = vpop.permute.xlu0 %1088
      %1094 = vxpose.xlu0.c.b16.start [1/8] %v1083, 128
      %1095 = vxpose.xlu0.c.b16.cont [2/8] 0, 128
      %1096 = vxpose.xlu0.c.b16.cont [3/8] 0, 128
      %1097 = vxpose.xlu0.c.b16.cont [4/8] 0, 128
      %1098 = vxpose.xlu0.c.b16.cont [5/8] 0, 128
      %1099 = vxpose.xlu0.c.b16.cont [6/8] 0, 128
      %1100 = vxpose.xlu0.c.b16.cont [7/8] 0, 128
      %1101 = vxpose.xlu0.c.b16.end [8/8] 0, 128
      %v1102 = vpop.trf.xlu0
      %v1103 = vpop.trf.xlu0
      %v1104 = vpop.trf.xlu0
      %v1105 = vpop.trf.xlu0
      %v1106 = vpop.trf.xlu0
      %v1107 = vpop.trf.xlu0
      %v1108 = vpop.trf.xlu0
      %v1109 = vpop.trf.xlu0
      %1110 = vxpose.xlu0.c.b16.start [1/8] %v1085, 128
      %1111 = vxpose.xlu0.c.b16.cont [2/8] 0, 128
      %1112 = vxpose.xlu0.c.b16.cont [3/8] 0, 128
      %1113 = vxpose.xlu0.c.b16.cont [4/8] 0, 128
      %1114 = vxpose.xlu0.c.b16.cont [5/8] 0, 128
      %1115 = vxpose.xlu0.c.b16.cont [6/8] 0, 128
      %1116 = vxpose.xlu0.c.b16.cont [7/8] 0, 128
      %1117 = vxpose.xlu0.c.b16.end [8/8] 0, 128
      %v1118 = vpop.trf.xlu0
      %v1119 = vpop.trf.xlu0
      %v1120 = vpop.trf.xlu0
      %v1121 = vpop.trf.xlu0
      %v1122 = vpop.trf.xlu0
      %v1123 = vpop.trf.xlu0
      %v1124 = vpop.trf.xlu0
      %v1125 = vpop.trf.xlu0
      %1126 = vxpose.xlu0.c.b16.start [1/8] %v1087, 128
      %1127 = vxpose.xlu0.c.b16.cont [2/8] 0, 128
      %1128 = vxpose.xlu0.c.b16.cont [3/8] 0, 128
      %1129 = vxpose.xlu0.c.b16.cont [4/8] 0, 128
      %1130 = vxpose.xlu0.c.b16.cont [5/8] 0, 128
      %1131 = vxpose.xlu0.c.b16.cont [6/8] 0, 128
      %1132 = vxpose.xlu0.c.b16.cont [7/8] 0, 128
      %1133 = vxpose.xlu0.c.b16.end [8/8] 0, 128
      %v1134 = vpop.trf.xlu0
      %v1135 = vpop.trf.xlu0
      %v1136 = vpop.trf.xlu0
      %v1137 = vpop.trf.xlu0
      %v1138 = vpop.trf.xlu0
      %v1139 = vpop.trf.xlu0
      %v1140 = vpop.trf.xlu0
      %v1141 = vpop.trf.xlu0
      %1142 = vxpose.xlu0.c.b16.start [1/8] %v1089, 128
      %1143 = vxpose.xlu0.c.b16.cont [2/8] 0, 128
      %1144 = vxpose.xlu0.c.b16.cont [3/8] 0, 128
      %1145 = vxpose.xlu0.c.b16.cont [4/8] 0, 128
      %1146 = vxpose.xlu0.c.b16.cont [5/8] 0, 128
      %1147 = vxpose.xlu0.c.b16.cont [6/8] 0, 128
      %1148 = vxpose.xlu0.c.b16.cont [7/8] 0, 128
      %1149 = vxpose.xlu0.c.b16.end [8/8] 0, 128
      %v1150 = vpop.trf.xlu0
      %v1151 = vpop.trf.xlu0
      %v1152 = vpop.trf.xlu0
      %v1153 = vpop.trf.xlu0
      %v1154 = vpop.trf.xlu0
      %v1155 = vpop.trf.xlu0
      %v1156 = vpop.trf.xlu0
      %v1157 = vpop.trf.xlu0
      %v1159 = vsel %vm837, %v1102, 0
      %v1162 = vsel %vm837, %v1078, 0
      %1164 = vmatprep.subr.bf16.mxu0 0
      %1165 = vmatpush1.bf16.xpose.msra.mxu0 0
      %1166 = vmatprep.subr.bf16.mxu0 0
      %1167 = vmatpush1.bf16.xpose.msra.mxu0 0
      %1168 = vmatprep.subr.bf16.mxu0 0
      %1169 = vmatpush1.bf16.xpose.msra.mxu0 0
      %1170 = vmatprep.subr.bf16.mxu0 0
      %1171 = vmatpush1.bf16.xpose.msra.mxu0 0
      %1172 = vmatprep.subr.bf16.mxu0 0
      %1173 = vmatpush1.bf16.xpose.msra.mxu0 0
      %1174 = vmatprep.subr.bf16.mxu0 0
      %1175 = vmatpush1.bf16.xpose.msra.mxu0 0
      %1176 = vmatprep.subr.bf16.mxu0 0
      %1177 = vmatpush1.bf16.xpose.msra.mxu0 0
      %1178 = vmatprep.subr.bf16.mxu0 0
      %1179 = vmatpush1.bf16.xpose.msra.mxu0 %v1162
      %1180 = vmatprep.subr.bf16.mxu0 0
      %1181 = vmatpush2.bf16.xpose.msra.mxu0 0
      %1182 = vmatprep.subr.bf16.mxu0 0
      %1183 = vmatpush2.bf16.xpose.msra.mxu0 0
      %1184 = vmatprep.subr.bf16.mxu0 0
      %1185 = vmatpush2.bf16.xpose.msra.mxu0 0
      %1186 = vmatprep.subr.bf16.mxu0 0
      %1187 = vmatpush2.bf16.xpose.msra.mxu0 0
      %1188 = vmatprep.subr.bf16.mxu0 0
      %1189 = vmatpush2.bf16.xpose.msra.mxu0 0
      %1190 = vmatprep.subr.bf16.mxu0 0
      %1191 = vmatpush2.bf16.xpose.msra.mxu0 0
      %1192 = vmatprep.subr.bf16.mxu0 0
      %1193 = vmatpush2.bf16.xpose.msra.mxu0 0
      %1194 = vmatprep.subr.bf16.mxu0 0
      %1195 = vmatpush2.bf16.xpose.msra.mxu0 0
      %1196 = vmatprep.mubr.bf16.mxu0 0
      %1197 = vmatmul.mubr.bf16.gmra.mxu0 %v1159
      %v1198 = vpop.f32.mrf.mxu0
      %v1199 = vadd.f32 0.0, %v1198
      %v1200 = vpop.f32.mrf.mxu0
      %v1201 = vpop.f32.mrf.mxu0
      %v1202 = vpop.f32.mrf.mxu0
      %1203 = vdwg.mxu0
      %v1205 = vsel %vm837, %v1118, 0
      %v1208 = vsel %vm837, %v1079, 0
      %1210 = vmatprep.subr.bf16.mxu0 0
      %1211 = vmatpush1.bf16.xpose.msra.mxu0 0
      %1212 = vmatprep.subr.bf16.mxu0 0
      %1213 = vmatpush1.bf16.xpose.msra.mxu0 0
      %1214 = vmatprep.subr.bf16.mxu0 0
      %1215 = vmatpush1.bf16.xpose.msra.mxu0 0
      %1216 = vmatprep.subr.bf16.mxu0 0
      %1217 = vmatpush1.bf16.xpose.msra.mxu0 0
      %1218 = vmatprep.subr.bf16.mxu0 0
      %1219 = vmatpush1.bf16.xpose.msra.mxu0 0
      %1220 = vmatprep.subr.bf16.mxu0 0
      %1221 = vmatpush1.bf16.xpose.msra.mxu0 0
      %1222 = vmatprep.subr.bf16.mxu0 0
      %1223 = vmatpush1.bf16.xpose.msra.mxu0 0
      %1224 = vmatprep.subr.bf16.mxu0 0
      %1225 = vmatpush1.bf16.xpose.msra.mxu0 %v1208
      %1226 = vmatprep.subr.bf16.mxu0 0
      %1227 = vmatpush2.bf16.xpose.msra.mxu0 0
      %1228 = vmatprep.subr.bf16.mxu0 0
      %1229 = vmatpush2.bf16.xpose.msra.mxu0 0
      %1230 = vmatprep.subr.bf16.mxu0 0
      %1231 = vmatpush2.bf16.xpose.msra.mxu0 0
      %1232 = vmatprep.subr.bf16.mxu0 0
      %1233 = vmatpush2.bf16.xpose.msra.mxu0 0
      %1234 = vmatprep.subr.bf16.mxu0 0
      %1235 = vmatpush2.bf16.xpose.msra.mxu0 0
      %1236 = vmatprep.subr.bf16.mxu0 0
      %1237 = vmatpush2.bf16.xpose.msra.mxu0 0
      %1238 = vmatprep.subr.bf16.mxu0 0
      %1239 = vmatpush2.bf16.xpose.msra.mxu0 0
      %1240 = vmatprep.subr.bf16.mxu0 0
      %1241 = vmatpush2.bf16.xpose.msra.mxu0 0
      %1242 = vmatprep.mubr.bf16.mxu0 0
      %1243 = vmatmul.mubr.bf16.gmra.mxu0 %v1205
      %v1244 = vpop.f32.mrf.mxu0
      %v1245 = vadd.f32 0.0, %v1244
      %v1246 = vpop.f32.mrf.mxu0
      %v1247 = vpop.f32.mrf.mxu0
      %v1248 = vpop.f32.mrf.mxu0
      %1249 = vdwg.mxu0
      %v1251 = vsel %vm837, %v1134, 0
      %v1254 = vsel %vm837, %v1080, 0
      %1256 = vmatprep.subr.bf16.mxu0 0
      %1257 = vmatpush1.bf16.xpose.msra.mxu0 0
      %1258 = vmatprep.subr.bf16.mxu0 0
      %1259 = vmatpush1.bf16.xpose.msra.mxu0 0
      %1260 = vmatprep.subr.bf16.mxu0 0
      %1261 = vmatpush1.bf16.xpose.msra.mxu0 0
      %1262 = vmatprep.subr.bf16.mxu0 0
      %1263 = vmatpush1.bf16.xpose.msra.mxu0 0
      %1264 = vmatprep.subr.bf16.mxu0 0
      %1265 = vmatpush1.bf16.xpose.msra.mxu0 0
      %1266 = vmatprep.subr.bf16.mxu0 0
      %1267 = vmatpush1.bf16.xpose.msra.mxu0 0
      %1268 = vmatprep.subr.bf16.mxu0 0
      %1269 = vmatpush1.bf16.xpose.msra.mxu0 0
      %1270 = vmatprep.subr.bf16.mxu0 0
      %1271 = vmatpush1.bf16.xpose.msra.mxu0 %v1254
      %1272 = vmatprep.subr.bf16.mxu0 0
      %1273 = vmatpush2.bf16.xpose.msra.mxu0 0
      %1274 = vmatprep.subr.bf16.mxu0 0
      %1275 = vmatpush2.bf16.xpose.msra.mxu0 0
      %1276 = vmatprep.subr.bf16.mxu0 0
      %1277 = vmatpush2.bf16.xpose.msra.mxu0 0
      %1278 = vmatprep.subr.bf16.mxu0 0
      %1279 = vmatpush2.bf16.xpose.msra.mxu0 0
      %1280 = vmatprep.subr.bf16.mxu0 0
      %1281 = vmatpush2.bf16.xpose.msra.mxu0 0
      %1282 = vmatprep.subr.bf16.mxu0 0
      %1283 = vmatpush2.bf16.xpose.msra.mxu0 0
      %1284 = vmatprep.subr.bf16.mxu0 0
      %1285 = vmatpush2.bf16.xpose.msra.mxu0 0
      %1286 = vmatprep.subr.bf16.mxu0 0
      %1287 = vmatpush2.bf16.xpose.msra.mxu0 0
      %1288 = vmatprep.mubr.bf16.mxu0 0
      %1289 = vmatmul.mubr.bf16.gmra.mxu0 %v1251
      %v1290 = vpop.f32.mrf.mxu0
      %v1291 = vadd.f32 0.0, %v1290
      %v1292 = vpop.f32.mrf.mxu0
      %v1293 = vpop.f32.mrf.mxu0
      %v1294 = vpop.f32.mrf.mxu0
      %1295 = vdwg.mxu0
      %v1297 = vsel %vm837, %v1150, 0
      %v1300 = vsel %vm837, %v1081, 0
      %1302 = vmatprep.subr.bf16.mxu0 0
      %1303 = vmatpush1.bf16.xpose.msra.mxu0 0
      %1304 = vmatprep.subr.bf16.mxu0 0
      %1305 = vmatpush1.bf16.xpose.msra.mxu0 0
      %1306 = vmatprep.subr.bf16.mxu0 0
      %1307 = vmatpush1.bf16.xpose.msra.mxu0 0
      %1308 = vmatprep.subr.bf16.mxu0 0
      %1309 = vmatpush1.bf16.xpose.msra.mxu0 0
      %1310 = vmatprep.subr.bf16.mxu0 0
      %1311 = vmatpush1.bf16.xpose.msra.mxu0 0
      %1312 = vmatprep.subr.bf16.mxu0 0
      %1313 = vmatpush1.bf16.xpose.msra.mxu0 0
      %1314 = vmatprep.subr.bf16.mxu0 0
      %1315 = vmatpush1.bf16.xpose.msra.mxu0 0
      %1316 = vmatprep.subr.bf16.mxu0 0
      %1317 = vmatpush1.bf16.xpose.msra.mxu0 %v1300
      %1318 = vmatprep.subr.bf16.mxu0 0
      %1319 = vmatpush2.bf16.xpose.msra.mxu0 0
      %1320 = vmatprep.subr.bf16.mxu0 0
      %1321 = vmatpush2.bf16.xpose.msra.mxu0 0
      %1322 = vmatprep.subr.bf16.mxu0 0
      %1323 = vmatpush2.bf16.xpose.msra.mxu0 0
      %1324 = vmatprep.subr.bf16.mxu0 0
      %1325 = vmatpush2.bf16.xpose.msra.mxu0 0
      %1326 = vmatprep.subr.bf16.mxu0 0
      %1327 = vmatpush2.bf16.xpose.msra.mxu0 0
      %1328 = vmatprep.subr.bf16.mxu0 0
      %1329 = vmatpush2.bf16.xpose.msra.mxu0 0
      %1330 = vmatprep.subr.bf16.mxu0 0
      %1331 = vmatpush2.bf16.xpose.msra.mxu0 0
      %1332 = vmatprep.subr.bf16.mxu0 0
      %1333 = vmatpush2.bf16.xpose.msra.mxu0 0
      %1334 = vmatprep.mubr.bf16.mxu0 0
      %1335 = vmatmul.mubr.bf16.gmra.mxu0 %v1297
      %v1336 = vpop.f32.mrf.mxu0
      %v1337 = vadd.f32 0.0, %v1336
      %v1338 = vpop.f32.mrf.mxu0
      %v1339 = vpop.f32.mrf.mxu0
      %v1340 = vpop.f32.mrf.mxu0
      %1341 = vdwg.mxu0
      %1342 = vxpose.xlu0.b32.start [1/16] %v1199, 128
      %1343 = vxpose.xlu0.b32.cont [2/16] 0.0, 128
      %1344 = vxpose.xlu0.b32.cont [3/16] 0.0, 128
      %1345 = vxpose.xlu0.b32.cont [4/16] 0.0, 128
      %1346 = vxpose.xlu0.b32.cont [5/16] 0.0, 128
      %1347 = vxpose.xlu0.b32.cont [6/16] 0.0, 128
      %1348 = vxpose.xlu0.b32.cont [7/16] 0.0, 128
      %1349 = vxpose.xlu0.b32.cont [8/16] 0.0, 128
      %1350 = vxpose.xlu0.b32.cont [9/16] 0.0, 128
      %1351 = vxpose.xlu0.b32.cont [10/16] 0.0, 128
      %1352 = vxpose.xlu0.b32.cont [11/16] 0.0, 128
      %1353 = vxpose.xlu0.b32.cont [12/16] 0.0, 128
      %1354 = vxpose.xlu0.b32.cont [13/16] 0.0, 128
      %1355 = vxpose.xlu0.b32.cont [14/16] 0.0, 128
      %1356 = vxpose.xlu0.b32.cont [15/16] 0.0, 128
      %1357 = vxpose.xlu0.b32.end [16/16] 0.0, 128
      %v1358 = vpop.trf.xlu0
      %v1359 = vpop.trf.xlu0
      %v1360 = vpop.trf.xlu0
      %v1361 = vpop.trf.xlu0
      %v1362 = vpop.trf.xlu0
      %v1363 = vpop.trf.xlu0
      %v1364 = vpop.trf.xlu0
      %v1365 = vpop.trf.xlu0
      %v1366 = vpop.trf.xlu0
      %v1367 = vpop.trf.xlu0
      %v1368 = vpop.trf.xlu0
      %v1369 = vpop.trf.xlu0
      %v1370 = vpop.trf.xlu0
      %v1371 = vpop.trf.xlu0
      %v1372 = vpop.trf.xlu0
      %v1373 = vpop.trf.xlu0
      %1374 = vxpose.xlu0.b32.start [1/16] %v1245, 128
      %1375 = vxpose.xlu0.b32.cont [2/16] 0.0, 128
      %1376 = vxpose.xlu0.b32.cont [3/16] 0.0, 128
      %1377 = vxpose.xlu0.b32.cont [4/16] 0.0, 128
      %1378 = vxpose.xlu0.b32.cont [5/16] 0.0, 128
      %1379 = vxpose.xlu0.b32.cont [6/16] 0.0, 128
      %1380 = vxpose.xlu0.b32.cont [7/16] 0.0, 128
      %1381 = vxpose.xlu0.b32.cont [8/16] 0.0, 128
      %1382 = vxpose.xlu0.b32.cont [9/16] 0.0, 128
      %1383 = vxpose.xlu0.b32.cont [10/16] 0.0, 128
      %1384 = vxpose.xlu0.b32.cont [11/16] 0.0, 128
      %1385 = vxpose.xlu0.b32.cont [12/16] 0.0, 128
      %1386 = vxpose.xlu0.b32.cont [13/16] 0.0, 128
      %1387 = vxpose.xlu0.b32.cont [14/16] 0.0, 128
      %1388 = vxpose.xlu0.b32.cont [15/16] 0.0, 128
      %1389 = vxpose.xlu0.b32.end [16/16] 0.0, 128
      %v1390 = vpop.trf.xlu0
      %v1391 = vpop.trf.xlu0
      %v1392 = vpop.trf.xlu0
      %v1393 = vpop.trf.xlu0
      %v1394 = vpop.trf.xlu0
      %v1395 = vpop.trf.xlu0
      %v1396 = vpop.trf.xlu0
      %v1397 = vpop.trf.xlu0
      %v1398 = vpop.trf.xlu0
      %v1399 = vpop.trf.xlu0
      %v1400 = vpop.trf.xlu0
      %v1401 = vpop.trf.xlu0
      %v1402 = vpop.trf.xlu0
      %v1403 = vpop.trf.xlu0
      %v1404 = vpop.trf.xlu0
      %v1405 = vpop.trf.xlu0
      %1406 = vxpose.xlu0.b32.start [1/16] %v1291, 128
      %1407 = vxpose.xlu0.b32.cont [2/16] 0.0, 128
      %1408 = vxpose.xlu0.b32.cont [3/16] 0.0, 128
      %1409 = vxpose.xlu0.b32.cont [4/16] 0.0, 128
      %1410 = vxpose.xlu0.b32.cont [5/16] 0.0, 128
      %1411 = vxpose.xlu0.b32.cont [6/16] 0.0, 128
      %1412 = vxpose.xlu0.b32.cont [7/16] 0.0, 128
      %1413 = vxpose.xlu0.b32.cont [8/16] 0.0, 128
      %1414 = vxpose.xlu0.b32.cont [9/16] 0.0, 128
      %1415 = vxpose.xlu0.b32.cont [10/16] 0.0, 128
      %1416 = vxpose.xlu0.b32.cont [11/16] 0.0, 128
      %1417 = vxpose.xlu0.b32.cont [12/16] 0.0, 128
      %1418 = vxpose.xlu0.b32.cont [13/16] 0.0, 128
      %1419 = vxpose.xlu0.b32.cont [14/16] 0.0, 128
      %1420 = vxpose.xlu0.b32.cont [15/16] 0.0, 128
      %1421 = vxpose.xlu0.b32.end [16/16] 0.0, 128
      %v1422 = vpop.trf.xlu0
      %v1423 = vpop.trf.xlu0
      %v1424 = vpop.trf.xlu0
      %v1425 = vpop.trf.xlu0
      %v1426 = vpop.trf.xlu0
      %v1427 = vpop.trf.xlu0
      %v1428 = vpop.trf.xlu0
      %v1429 = vpop.trf.xlu0
      %v1430 = vpop.trf.xlu0
      %v1431 = vpop.trf.xlu0
      %v1432 = vpop.trf.xlu0
      %v1433 = vpop.trf.xlu0
      %v1434 = vpop.trf.xlu0
      %v1435 = vpop.trf.xlu0
      %v1436 = vpop.trf.xlu0
      %v1437 = vpop.trf.xlu0
      %1438 = vxpose.xlu0.b32.start [1/16] %v1337, 128
      %1439 = vxpose.xlu0.b32.cont [2/16] 0.0, 128
      %1440 = vxpose.xlu0.b32.cont [3/16] 0.0, 128
      %1441 = vxpose.xlu0.b32.cont [4/16] 0.0, 128
      %1442 = vxpose.xlu0.b32.cont [5/16] 0.0, 128
      %1443 = vxpose.xlu0.b32.cont [6/16] 0.0, 128
      %1444 = vxpose.xlu0.b32.cont [7/16] 0.0, 128
      %1445 = vxpose.xlu0.b32.cont [8/16] 0.0, 128
      %1446 = vxpose.xlu0.b32.cont [9/16] 0.0, 128
      %1447 = vxpose.xlu0.b32.cont [10/16] 0.0, 128
      %1448 = vxpose.xlu0.b32.cont [11/16] 0.0, 128
      %1449 = vxpose.xlu0.b32.cont [12/16] 0.0, 128
      %1450 = vxpose.xlu0.b32.cont [13/16] 0.0, 128
      %1451 = vxpose.xlu0.b32.cont [14/16] 0.0, 128
      %1452 = vxpose.xlu0.b32.cont [15/16] 0.0, 128
      %1453 = vxpose.xlu0.b32.end [16/16] 0.0, 128
      %v1454 = vpop.trf.xlu0
      %v1455 = vpop.trf.xlu0
      %v1456 = vpop.trf.xlu0
      %v1457 = vpop.trf.xlu0
      %v1458 = vpop.trf.xlu0
      %v1459 = vpop.trf.xlu0
      %v1460 = vpop.trf.xlu0
      %v1461 = vpop.trf.xlu0
      %v1462 = vpop.trf.xlu0
      %v1463 = vpop.trf.xlu0
      %v1464 = vpop.trf.xlu0
      %v1465 = vpop.trf.xlu0
      %v1466 = vpop.trf.xlu0
      %v1467 = vpop.trf.xlu0
      %v1468 = vpop.trf.xlu0
      %v1469 = vpop.trf.xlu0
      %v1470 = vcombine.low %v1358, %v1422
      %v1471 = vcombine.high %v1358, %v1422
      %v1473 = vunpack.c.l.s4 1983009808
      %v1474 = vunpack.c.0.s8 %v1473
      %v1475 = vlaneseq
      %v1476 = vshrl.u32 %v1475, 7
      %v1477 = vsub.s32 %v1474, %v1476
      %v1478 = vrot.slane %v1470, %v1477
      %v1480 = vunpack.c.l.s4 1983009808
      %v1481 = vunpack.c.0.s8 %v1480
      %v1482 = vlaneseq
      %v1483 = vshrl.u32 %v1482, 7
      %v1484 = vsub.s32 %v1481, %v1483
      %v1485 = vrot.slane %v1471, %v1484
      %v1486 = vcombine.low %v1390, %v1454
      %v1487 = vcombine.high %v1390, %v1454
      %v1489 = vunpack.c.l.s4 1983009808
      %v1490 = vunpack.c.0.s8 %v1489
      %v1491 = vlaneseq
      %v1492 = vshrl.u32 %v1491, 7
      %v1493 = vsub.s32 %v1490, %v1492
      %v1494 = vrot.slane %v1486, %v1493
      %v1496 = vunpack.c.l.s4 1983009808
      %v1497 = vunpack.c.0.s8 %v1496
      %v1498 = vlaneseq
      %v1499 = vshrl.u32 %v1498, 7
      %v1500 = vsub.s32 %v1497, %v1499
      %v1501 = vrot.slane %v1487, %v1500
      %v1502 = vcombine.low %v1478, %v1494
      %v1503 = vcombine.high %v1478, %v1494
      %v1505 = vunpack.c.l.s4 1934713408
      %v1506 = vunpack.c.0.s8 %v1505
      %v1507 = vlaneseq
      %v1508 = vshrl.u32 %v1507, 7
      %v1509 = vsub.s32 %v1506, %v1508
      %v1510 = vrot.slane %v1502, %v1509
      %v1512 = vunpack.c.l.s4 1934713408
      %v1513 = vunpack.c.0.s8 %v1512
      %v1514 = vlaneseq
      %v1515 = vshrl.u32 %v1514, 7
      %v1516 = vsub.s32 %v1513, %v1515
      %v1517 = vrot.slane %v1503, %v1516
      %v1518 = vcombine.low %v1485, %v1501
      %v1519 = vcombine.high %v1485, %v1501
      %v1521 = vunpack.c.l.s4 1934713408
      %v1522 = vunpack.c.0.s8 %v1521
      %v1523 = vlaneseq
      %v1524 = vshrl.u32 %v1523, 7
      %v1525 = vsub.s32 %v1522, %v1524
      %v1526 = vrot.slane %v1518, %v1525
      %v1528 = vunpack.c.l.s4 1934713408
      %v1529 = vunpack.c.0.s8 %v1528
      %v1530 = vlaneseq
      %v1531 = vshrl.u32 %v1530, 7
      %v1532 = vsub.s32 %v1529, %v1531
      %v1533 = vrot.slane %v1519, %v1532
      %v1534 = vcombine.high %v1510, 0.0
      %v1535 = vcombine.high %v1517, 0.0
      %v1536 = vcombine.high %v1526, 0.0
      %v1537 = vcombine.high %v1533, 0.0
      %v1538 = vcombine.low %v1510, %v1517
      %v1540 = vunpack.c.l.s4 1983009808
      %v1541 = vunpack.c.0.s8 %v1540
      %v1542 = vlaneseq
      %v1543 = vshrl.u32 %v1542, 7
      %v1544 = vsub.s32 %v1541, %v1543
      %v1545 = vrot.slane %v1538, %v1544
      %v1546 = vcombine.low %v1534, %v1535
      %v1548 = vunpack.c.l.s4 1983009808
      %v1549 = vunpack.c.0.s8 %v1548
      %v1550 = vlaneseq
      %v1551 = vshrl.u32 %v1550, 7
      %v1552 = vsub.s32 %v1549, %v1551
      %v1553 = vrot.slane %v1546, %v1552
      %v1554 = vcombine.low %v1526, %v1533
      %v1556 = vunpack.c.l.s4 1983009808
      %v1557 = vunpack.c.0.s8 %v1556
      %v1558 = vlaneseq
      %v1559 = vshrl.u32 %v1558, 7
      %v1560 = vsub.s32 %v1557, %v1559
      %v1561 = vrot.slane %v1554, %v1560
      %v1562 = vcombine.low %v1536, %v1537
      %v1564 = vunpack.c.l.s4 1983009808
      %v1565 = vunpack.c.0.s8 %v1564
      %v1566 = vlaneseq
      %v1567 = vshrl.u32 %v1566, 7
      %v1568 = vsub.s32 %v1565, %v1567
      %v1569 = vrot.slane %v1562, %v1568
      %v1570 = vcombine.low %v1545, %v1553
      %v1571 = vcombine.high %v1545, %v1553
      %v1573 = vunpack.c.l.s4 1934713408
      %v1574 = vunpack.c.0.s8 %v1573
      %v1575 = vlaneseq
      %v1576 = vshrl.u32 %v1575, 7
      %v1577 = vsub.s32 %v1574, %v1576
      %v1578 = vrot.slane %v1570, %v1577
      %v1580 = vunpack.c.l.s4 1934713408
      %v1581 = vunpack.c.0.s8 %v1580
      %v1582 = vlaneseq
      %v1583 = vshrl.u32 %v1582, 7
      %v1584 = vsub.s32 %v1581, %v1583
      %v1585 = vrot.slane %v1571, %v1584
      %v1586 = vcombine.low %v1561, %v1569
      %v1587 = vcombine.high %v1561, %v1569
      %v1589 = vunpack.c.l.s4 1934713408
      %v1590 = vunpack.c.0.s8 %v1589
      %v1591 = vlaneseq
      %v1592 = vshrl.u32 %v1591, 7
      %v1593 = vsub.s32 %v1590, %v1592
      %v1594 = vrot.slane %v1586, %v1593
      %v1596 = vunpack.c.l.s4 1934713408
      %v1597 = vunpack.c.0.s8 %v1596
      %v1598 = vlaneseq
      %v1599 = vshrl.u32 %v1598, 7
      %v1600 = vsub.s32 %v1597, %v1599
      %v1601 = vrot.slane %v1587, %v1600
      %v1602 = vcombine.low %v1578, %v1594
      %v1603 = vcombine.high %v1578, %v1594
      %v1604 = vcombine.low %v1585, %v1601
      %v1605 = vcombine.high %v1585, %v1601
      %1607 = vrot.lane.b32.xlu0 %v1603, 8
      %v1608 = vpop.permute.xlu0 %1607
      %1611 = vrot.lane.b32.xlu0 %v1604, 16
      %v1612 = vpop.permute.xlu0 %1611
      %1615 = vrot.lane.b32.xlu0 %v1605, 24
      %v1616 = vpop.permute.xlu0 %1615
      %v1618 = vsel %vm837, %v1602, %v1608
      %vm1619 = vcmask 130048
      %v1620 = vsel %vm1619, %v1618, %v1612
      %vm1621 = vcmask 195584
      %v1622 = vsel %vm1621, %v1620, %v1616
      %v1623 = vpack.c.bf16 %v1622, %v1622
      %v1624 = vld [vmem:[%s623] sm:$0xf]
      %v1625 = vld [vmem:[%s623 + $0x4] sm:$0xf]
      %v1626 = vld [vmem:[%s623 + $0x8] sm:$0xf]
      %v1627 = vld [vmem:[%s623 + $0xc] sm:$0xf]
      %v1628 = vld [vmem:[%s626] sm:$0x1]
      %v1630 = vlaneseq
      %v1631 = vshrl.u32 %v1630, 7
      %v1632 = vsub.s32 0, %v1631
      %v1633 = vrot.slane %v1628, %v1632
      %v1639 = vunpack.c.l.b16 %v1624
      %v1640 = vunpack.c.l.b16 %v1625
      %v1641 = vunpack.c.l.b16 %v1626
      %v1642 = vunpack.c.l.b16 %v1627
      %v1643 = vpack.c.b16 %v1640, %v1639
      %v1644 = vpack.c.b16 %v1642, %v1641
      %v1648 = vsel %vm664, %v1623, 0
      %1650 = vmatprep.subr.bf16.mxu0 0
      %1651 = vmatpush1.bf16.msra.mxu0 0
      %1652 = vmatprep.subr.bf16.mxu0 0
      %1653 = vmatpush1.bf16.msra.mxu0 0
      %1654 = vmatprep.subr.bf16.mxu0 0
      %1655 = vmatpush1.bf16.msra.mxu0 0
      %1656 = vmatprep.subr.bf16.mxu0 0
      %1657 = vmatpush1.bf16.msra.mxu0 0
      %1658 = vmatprep.subr.bf16.mxu0 0
      %1659 = vmatpush1.bf16.msra.mxu0 0
      %1660 = vmatprep.subr.bf16.mxu0 0
      %1661 = vmatpush1.bf16.msra.mxu0 0
      %1662 = vmatprep.subr.bf16.mxu0 0
      %1663 = vmatpush1.bf16.msra.mxu0 %v1644
      %1664 = vmatprep.subr.bf16.mxu0 0
      %1665 = vmatpush1.bf16.msra.mxu0 %v1643
      %1666 = vmatprep.subr.bf16.mxu0 0
      %1667 = vmatpush2.bf16.msra.mxu0 0
      %1668 = vmatprep.subr.bf16.mxu0 0
      %1669 = vmatpush2.bf16.msra.mxu0 0
      %1670 = vmatprep.subr.bf16.mxu0 0
      %1671 = vmatpush2.bf16.msra.mxu0 0
      %1672 = vmatprep.subr.bf16.mxu0 0
      %1673 = vmatpush2.bf16.msra.mxu0 0
      %1674 = vmatprep.subr.bf16.mxu0 0
      %1675 = vmatpush2.bf16.msra.mxu0 0
      %1676 = vmatprep.subr.bf16.mxu0 0
      %1677 = vmatpush2.bf16.msra.mxu0 0
      %1678 = vmatprep.subr.bf16.mxu0 0
      %1679 = vmatpush2.bf16.msra.mxu0 0
      %1680 = vmatprep.subr.bf16.mxu0 0
      %1681 = vmatpush2.bf16.msra.mxu0 0
      %1682 = vmatprep.mubr.bf16.mxu0 0
      %1683 = vmatmul.mubr.bf16.gmra.mxu0 %v1648
      %v1684 = vpop.f32.mrf.mxu0
      %v1685 = vadd.f32 %v1633, %v1684
      %v1686 = vpop.f32.mrf.mxu0
      %v1687 = vpop.f32.mrf.mxu0
      %v1688 = vpop.f32.mrf.mxu0
      %1689 = vdwg.mxu0
      %v1690 = vadd.f32 %v661, %v1685
      %v1691 = vld [vmem:[%s629] sm:$0x1]
      %v1692 = vld [vmem:[%s632] sm:$0x1]
      %v1693 = vsel %vm664, %v1690, 0.0
      %1694 = vadd.xlane.f32.xlu0 %v1693
      %v1695 = vpop.xlane.xlu0 %1694
      %v1696 = vmul.f32 %v1695, %v668
      %v1697 = vsub.f32 %v1690, %v1696
      %v1698 = vmul.f32 %v1697, %v1697
      %v1699 = vsel %vm664, %v1698, 0.0
      %1700 = vadd.xlane.f32.xlu0 %v1699
      %v1701 = vpop.xlane.xlu0 %1700
      %v1702 = vmul.f32 %v1701, %v668
      %v1704 = vlaneseq
      %v1705 = vshrl.u32 %v1704, 7
      %v1706 = vsub.s32 0, %v1705
      %v1707 = vrot.slane %v1691, %v1706
      %v1709 = vmul.f32 %v1707, %v1697
      %v1710 = vadd.f32 %v1702, 1e-05
      %v1711 = vrsqrt.pop %v1710
      %v1712 = vmul.f32 %v1709, %v1711
      %v1714 = vlaneseq
      %v1715 = vshrl.u32 %v1714, 7
      %v1716 = vsub.s32 0, %v1715
      %v1717 = vrot.slane %v1692, %v1716
      %v1719 = vadd.f32 %v1712, %v1717
      %v1720 = vpack.c.bf16 %v1719, %v1719
      %v1721 = vld [vmem:[%s637] sm:$0xf]
      %v1722 = vld [vmem:[%s637 + $0x4] sm:$0xf]
      %v1723 = vld [vmem:[%s637 + $0x8] sm:$0xf]
      %v1724 = vld [vmem:[%s637 + $0xc] sm:$0xf]
      %v1725 = vld [vmem:[%s640] sm:$0x1]
      %v1727 = vlaneseq
      %v1728 = vshrl.u32 %v1727, 7
      %v1729 = vsub.s32 0, %v1728
      %v1730 = vrot.slane %v1725, %v1729
      %v1736 = vunpack.c.l.b16 %v1721
      %v1737 = vunpack.c.l.b16 %v1722
      %v1738 = vunpack.c.l.b16 %v1723
      %v1739 = vunpack.c.l.b16 %v1724
      %v1740 = vpack.c.b16 %v1737, %v1736
      %v1741 = vpack.c.b16 %v1739, %v1738
      %v1745 = vsel %vm664, %v1720, 0
      %1747 = vmatprep.subr.bf16.mxu0 0
      %1748 = vmatpush1.bf16.msra.mxu0 0
      %1749 = vmatprep.subr.bf16.mxu0 0
      %1750 = vmatpush1.bf16.msra.mxu0 0
      %1751 = vmatprep.subr.bf16.mxu0 0
      %1752 = vmatpush1.bf16.msra.mxu0 0
      %1753 = vmatprep.subr.bf16.mxu0 0
      %1754 = vmatpush1.bf16.msra.mxu0 0
      %1755 = vmatprep.subr.bf16.mxu0 0
      %1756 = vmatpush1.bf16.msra.mxu0 0
      %1757 = vmatprep.subr.bf16.mxu0 0
      %1758 = vmatpush1.bf16.msra.mxu0 0
      %1759 = vmatprep.subr.bf16.mxu0 0
      %1760 = vmatpush1.bf16.msra.mxu0 %v1741
      %1761 = vmatprep.subr.bf16.mxu0 0
      %1762 = vmatpush1.bf16.msra.mxu0 %v1740
      %1763 = vmatprep.subr.bf16.mxu0 0
      %1764 = vmatpush2.bf16.msra.mxu0 0
      %1765 = vmatprep.subr.bf16.mxu0 0
      %1766 = vmatpush2.bf16.msra.mxu0 0
      %1767 = vmatprep.subr.bf16.mxu0 0
      %1768 = vmatpush2.bf16.msra.mxu0 0
      %1769 = vmatprep.subr.bf16.mxu0 0
      %1770 = vmatpush2.bf16.msra.mxu0 0
      %1771 = vmatprep.subr.bf16.mxu0 0
      %1772 = vmatpush2.bf16.msra.mxu0 0
      %1773 = vmatprep.subr.bf16.mxu0 0
      %1774 = vmatpush2.bf16.msra.mxu0 0
      %1775 = vmatprep.subr.bf16.mxu0 0
      %1776 = vmatpush2.bf16.msra.mxu0 0
      %1777 = vmatprep.subr.bf16.mxu0 0
      %1778 = vmatpush2.bf16.msra.mxu0 0
      %1779 = vmatprep.mubr.bf16.mxu0 0
      %1780 = vmatmul.mubr.bf16.gmra.mxu0 %v1745
      %v1781 = vpop.f32.mrf.mxu0
      %v1782 = vadd.f32 %v1730, %v1781
      %v1783 = vpop.f32.mrf.mxu0
      %v1784 = vpop.f32.mrf.mxu0
      %v1785 = vpop.f32.mrf.mxu0
      %1786 = vdwg.mxu0
      %v1787 = vmul.f32 %v1782, 0.5
      %v1788 = vmul.f32 %v1782, 0.044715
      %v1789 = vmul.f32 %v1788, %v1782
      %v1790 = vmul.f32 %v1789, %v1782
      %v1791 = vadd.f32 %v1782, %v1790
      %v1792 = vmul.f32 %v1791, 0.7978846
      %v1793 = vtanh.pop %v1792
      %v1794 = vadd.f32 %v1793, 1.0
      %v1795 = vmul.f32 %v1787, %v1794
      %v1796 = vpack.c.bf16 %v1795, %v1795
      %v1797 = vld [vmem:[%s645] sm:$0xf]
      %v1798 = vld [vmem:[%s645 + $0x4] sm:$0xf]
      %v1799 = vld [vmem:[%s645 + $0x8] sm:$0xf]
      %v1800 = vld [vmem:[%s645 + $0xc] sm:$0xf]
      %v1801 = vld [vmem:[%s645 + $0x10] sm:$0xf]
      %v1802 = vld [vmem:[%s645 + $0x14] sm:$0xf]
      %v1803 = vld [vmem:[%s645 + $0x18] sm:$0xf]
      %v1804 = vld [vmem:[%s645 + $0x1c] sm:$0xf]
      %v1805 = vld [vmem:[%s645 + $0x20] sm:$0xf]
      %v1806 = vld [vmem:[%s645 + $0x24] sm:$0xf]
      %v1807 = vld [vmem:[%s645 + $0x28] sm:$0xf]
      %v1808 = vld [vmem:[%s645 + $0x2c] sm:$0xf]
      %v1809 = vld [vmem:[%s645 + $0x30] sm:$0xf]
      %v1810 = vld [vmem:[%s645 + $0x34] sm:$0xf]
      %v1811 = vld [vmem:[%s645 + $0x38] sm:$0xf]
      %v1812 = vld [vmem:[%s645 + $0x3c] sm:$0xf]
      %v1829 = vunpack.c.l.b16 %v1797
      %v1830 = vunpack.c.l.b16 %v1798
      %v1831 = vunpack.c.l.b16 %v1799
      %v1832 = vunpack.c.l.b16 %v1800
      %v1833 = vunpack.c.l.b16 %v1801
      %v1834 = vunpack.c.l.b16 %v1802
      %v1835 = vunpack.c.l.b16 %v1803
      %v1836 = vunpack.c.l.b16 %v1804
      %v1837 = vunpack.c.l.b16 %v1805
      %v1838 = vunpack.c.l.b16 %v1806
      %v1839 = vunpack.c.l.b16 %v1807
      %v1840 = vunpack.c.l.b16 %v1808
      %v1841 = vunpack.c.l.b16 %v1809
      %v1842 = vunpack.c.l.b16 %v1810
      %v1843 = vunpack.c.l.b16 %v1811
      %v1844 = vunpack.c.l.b16 %v1812
      %v1845 = vpack.c.b16 %v1830, %v1829
      %v1846 = vpack.c.b16 %v1832, %v1831
      %v1847 = vpack.c.b16 %v1834, %v1833
      %v1848 = vpack.c.b16 %v1836, %v1835
      %v1849 = vpack.c.b16 %v1838, %v1837
      %v1850 = vpack.c.b16 %v1840, %v1839
      %v1851 = vpack.c.b16 %v1842, %v1841
      %v1852 = vpack.c.b16 %v1844, %v1843
      %1861 = vmatprep.subr.bf16.mxu0 0
      %1862 = vmatpush1.bf16.msra.mxu0 %v1852
      %1863 = vmatprep.subr.bf16.mxu0 0
      %1864 = vmatpush1.bf16.msra.mxu0 %v1851
      %1865 = vmatprep.subr.bf16.mxu0 0
      %1866 = vmatpush1.bf16.msra.mxu0 %v1850
      %1867 = vmatprep.subr.bf16.mxu0 0
      %1868 = vmatpush1.bf16.msra.mxu0 %v1849
      %1869 = vmatprep.subr.bf16.mxu0 0
      %1870 = vmatpush1.bf16.msra.mxu0 %v1848
      %1871 = vmatprep.subr.bf16.mxu0 0
      %1872 = vmatpush1.bf16.msra.mxu0 %v1847
      %1873 = vmatprep.subr.bf16.mxu0 0
      %1874 = vmatpush1.bf16.msra.mxu0 %v1846
      %1875 = vmatprep.subr.bf16.mxu0 0
      %1876 = vmatpush1.bf16.msra.mxu0 %v1845
      %1877 = vmatprep.subr.bf16.mxu0 0
      %1878 = vmatpush2.bf16.msra.mxu0 0
      %1879 = vmatprep.subr.bf16.mxu0 0
      %1880 = vmatpush2.bf16.msra.mxu0 0
      %1881 = vmatprep.subr.bf16.mxu0 0
      %1882 = vmatpush2.bf16.msra.mxu0 0
      %1883 = vmatprep.subr.bf16.mxu0 0
      %1884 = vmatpush2.bf16.msra.mxu0 0
      %1885 = vmatprep.subr.bf16.mxu0 0
      %1886 = vmatpush2.bf16.msra.mxu0 0
      %1887 = vmatprep.subr.bf16.mxu0 0
      %1888 = vmatpush2.bf16.msra.mxu0 0
      %1889 = vmatprep.subr.bf16.mxu0 0
      %1890 = vmatpush2.bf16.msra.mxu0 0
      %1891 = vmatprep.subr.bf16.mxu0 0
      %1892 = vmatpush2.bf16.msra.mxu0 0
      %1893 = vmatprep.mubr.bf16.mxu0 0
      %1894 = vmatmul.mubr.bf16.gmra.mxu0 %v1796
      %v1895 = vpop.f32.mrf.mxu0
      %v1896 = vadd.f32 0.0, %v1895
      %v1897 = vpop.f32.mrf.mxu0
      %v1898 = vpop.f32.mrf.mxu0
      %v1899 = vpop.f32.mrf.mxu0
      %1900 = vdwg.mxu0
      %v1901 = vadd.f32 %v1690, %v1896
      %v1902 = vld [vmem:[%s648] sm:$0x1]
      %v1904 = vlaneseq
      %v1905 = vshrl.u32 %v1904, 7
      %v1906 = vsub.s32 0, %v1905
      %v1907 = vrot.slane %v1902, %v1906
      %v1909 = vadd.f32 %v1901, %v1907
      %p1910 = scmp.lt.s32.totalorder %s30, 1
      // Predicated region
      $region81: #{gpt_forward.2} parent=75 // pred_check
        %p1911 = pneg %p1910
      $region82: #{gpt_forward.2} parent=75 // pred_check_branch
        %1913 = sbr.rel (%p1911) target = $region84
      $region83: #{gpt_forward.2} parent=75 // pred_region
        %1914 = vst.msk [vmem:[%s652] sm:$0xff] %vm664, %v1909
      $region84: #{gpt_forward.2} parent=75 // pred_fallthru
        _
      %p1915 = scmp.eq.s32.totalorder %s30, 1
      // Predicated region
      $region85: #{gpt_forward.2} parent=75 // pred_check
        %p1916 = pneg %p1915
      $region86: #{gpt_forward.2} parent=75 // pred_check_branch
        %1918 = sbr.rel (%p1916) target = $region88
      $region87: #{gpt_forward.2} parent=75 // pred_region
        %v1919 = vld [vmem:[%s12] sm:$0x1]
        %v1920 = vld [vmem:[%s13] sm:$0x1]
        %v1921 = vsel %vm664, %v1909, 0.0
        %1922 = vadd.xlane.f32.xlu0 %v1921
        %v1923 = vpop.xlane.xlu0 %1922
        %v1924 = vmul.f32 %v1923, %v668
        %v1925 = vsub.f32 %v1909, %v1924
        %v1926 = vmul.f32 %v1925, %v1925
        %v1927 = vsel %vm664, %v1926, 0.0
        %1928 = vadd.xlane.f32.xlu0 %v1927
        %v1929 = vpop.xlane.xlu0 %1928
        %v1930 = vmul.f32 %v1929, %v668
        %v1932 = vlaneseq
        %v1933 = vshrl.u32 %v1932, 7
        %v1934 = vsub.s32 0, %v1933
        %v1935 = vrot.slane %v1919, %v1934
        %v1937 = vmul.f32 %v1935, %v1925
        %v1938 = vadd.f32 %v1930, 1e-05
        %v1939 = vrsqrt.pop %v1938
        %v1940 = vmul.f32 %v1937, %v1939
        %v1942 = vlaneseq
        %v1943 = vshrl.u32 %v1942, 7
        %v1944 = vsub.s32 0, %v1943
        %v1945 = vrot.slane %v1920, %v1944
        %v1947 = vadd.f32 %v1940, %v1945
        %1948 = vst.msk [vmem:[%s652] sm:$0xff] %vm664, %v1947
      $region88: #{gpt_forward.2} parent=75 // pred_fallthru
        _
      %p1949 = scmp.lt.s32.totalorder %s29, 1
      %s1950 = scalar_select %p1949, %s29, 1
      %s1951 = smul.addr %s1950, 8
      %s1952 = scalar_lea.vmem %s14, %s1951
      // Predicated region
      $region89: #{gpt_forward.2} parent=75 // pred_check
        %p1953 = pneg %p409
      $region90: #{gpt_forward.2} parent=75 // pred_check_branch
        %1955 = sbr.rel (%p1953) target = $region92
      $region91: #{gpt_forward.2} parent=75 // pred_region
        _
      $region92: #{gpt_forward.2} parent=75 // pred_fallthru
        _
    $region76: #{gpt_forward.2} parent=5 // pred_fallthru
      _
    %p1956 = scmp.le.s32.totalorder 2, %s20
    // Predicated region
    $region93: #{gpt_forward.2} parent=5 // pred_check
      %p1957 = pneg %p1956
    $region94: #{gpt_forward.2} parent=5 // pred_check_branch
      %1959 = sbr.rel (%p1957) target = $region96
    $region95: #{gpt_forward.2} parent=5 // pred_region
      %s1960 = ssub.s32 %s20, 2
      // Predicated region
      $region97: #{gpt_forward.2} parent=95 // pred_check
        %p1961 = pneg %p415
      $region98: #{gpt_forward.2} parent=95 // pred_check_branch
        %1963 = sbr.rel (%p1961) target = $region100
      $region99: #{gpt_forward.2} parent=95 // pred_region
        %p1964 = scmp.lt.s32.totalorder %s31, 1
        %s1965 = scalar_select %p1964, %s31, 1
        %s1966 = smul.addr %s1965, 8
        %s1967 = scalar_lea.vmem %s14, %s1966
      $region100: #{gpt_forward.2} parent=95 // pred_fallthru
        _
    $region96: #{gpt_forward.2} parent=5 // pred_fallthru
      _
  $region6: #{gpt_forward.2} parent=0 // loop_footer
    %s24 = sadd.s32 1, %s20
  $region7: #{gpt_forward.2} parent=0 // loop_footer_branch
    %19 = sbr.rel target = $region3
  $region8: #{gpt_forward.2} parent=0 // loop_exit
    _

</llo_original>
